<compile_context>
chip_gen: v6e
topology: v6e:2x2x1
jax: 0.10.0
libtpu: 0.0.40
codegen_flags: <defaults>
</compile_context>

<pallas_src>
import functools
import math

import jax
import jax.numpy as jnp
from jax.experimental import pallas as pl
from jax.experimental.pallas import tpu as pltpu


# --------------------------- small tiling helpers ----------------------------

def _round_up(x, m):
    return ((x + m - 1) // m) * m


def _row_tile(M):
    # Big row tiles amortize the ~0.35us/step overhead and feed the MXU properly.
    return 128 if M >= 128 else _round_up(M, 8)


def _col_tile(N):
    # Lane-dense column tiles (multiples of 128/256/512) or the full dim if small/odd.
    for t in (512, 256, 128):
        if N % t == 0:
            return t
    return N


def _pad_rows(x2d, tm):
    M = x2d.shape[0]
    Mp = _round_up(M, tm)
    if Mp != M:
        x2d = jnp.pad(x2d, ((0, Mp - M), (0, 0)))
    return x2d, M


def _rms(x, w):
    var = jnp.mean(x * x, axis=-1, keepdims=True)
    return x * jax.lax.rsqrt(var + 1e-6) * w


# ------------------------------ Pallas kernels --------------------------------

def norm_qkv_kernel(x_ref, wn_ref, wq_ref, bq_ref, wk_ref, bk_ref, wv_ref, bv_ref,
                    q_ref, k_ref, v_ref):
    # Fused RMSNorm + three projections: x tile is read once from HBM.
    x = x_ref[...]                                              # (tm, D) f32
    xn = _rms(x, wn_ref[...]).astype(jnp.bfloat16)
    q_ref[...] = (jnp.dot(xn, wq_ref[...], preferred_element_type=jnp.float32)
                  + bq_ref[...]).astype(q_ref.dtype)
    k_ref[...] = (jnp.dot(xn, wk_ref[...], preferred_element_type=jnp.float32)
                  + bk_ref[...]).astype(k_ref.dtype)
    v_ref[...] = (jnp.dot(xn, wv_ref[...], preferred_element_type=jnp.float32)
                  + bv_ref[...]).astype(v_ref.dtype)


def attn_rope_oproj_kernel(q_ref, k_ref, v_ref, cos_ref, sin_ref, x_ref,
                           wo_ref, bo_ref, o_ref, *, heads, scale):
    # One grid step per batch; q/k/v blocks are lane-dense (S, H*Dh).
    # RoPE applied in-kernel; attention output is projected through W_o and added
    # to the residual stream in the same kernel (no extra HBM round trip).
    # TODO(synk): for long-context S, convert to a KV-tiled flash-style grid with
    #             online softmax instead of materializing the full (S, S) scores.
    S = q_ref.shape[1]
    D = q_ref.shape[2]
    Dh = D // heads
    half = Dh // 2

    qf = q_ref[0].astype(jnp.float32)                           # (S, D)
    kf = k_ref[0].astype(jnp.float32)
    v = v_ref[0]                                                # (S, D) bf16
    cos = cos_ref[...]                                          # (S, Dh) f32
    sin = sin_ref[...]

    row = jax.lax.broadcasted_iota(jnp.int32, (S, S), 0)
    col = jax.lax.broadcasted_iota(jnp.int32, (S, S), 1)
    causal = col <= row

    def rope(xh):                                               # (S, Dh) f32
        rot = jnp.concatenate([-xh[:, half:], xh[:, :half]], axis=-1)
        return xh * cos + rot * sin

    outs = []
    for h in range(heads):                                      # unrolled, small H
        lo = h * Dh
        qh = rope(qf[:, lo:lo + Dh]).astype(jnp.bfloat16)
        kh = rope(kf[:, lo:lo + Dh]).astype(jnp.bfloat16)
        vh = v[:, lo:lo + Dh]
        s = jax.lax.dot_general(qh, kh, (((1,), (1,)), ((), ())),
                                preferred_element_type=jnp.float32) * scale
        s = jnp.where(causal, s, -1e30)
        m = jnp.max(s, axis=-1, keepdims=True)
        p = jnp.exp(s - m)
        p = p * pl.reciprocal(jnp.sum(p, axis=-1, keepdims=True), approx=True)
        outs.append(jnp.dot(p.astype(jnp.bfloat16), vh,
                            preferred_element_type=jnp.float32))
    attn = jnp.concatenate(outs, axis=-1).astype(jnp.bfloat16)  # (S, D) lane-dense
    proj = jnp.dot(attn, wo_ref[...], preferred_element_type=jnp.float32)
    o_ref[0] = x_ref[0] + proj + bo_ref[...]                    # residual add, f32


def norm_mlp_kernel(h_ref, wn_ref, wg_ref, bg_ref, wu_ref, bu_ref, wd_ref, bd_ref,
                    o_ref, xn_ref):
    # Fused RMSNorm + GatedMLP + residual. Grid = (row tiles, hidden chunks);
    # hidden chunk axis is a reduction accumulated into the resident output block.
    c = pl.program_id(1)

    @pl.when(c == 0)
    def _():
        h = h_ref[...]                                          # (tm, D) f32
        xn_ref[...] = _rms(h, wn_ref[...]).astype(jnp.bfloat16)
        o_ref[...] = h + bd_ref[...]                            # residual + down-proj bias

    xn = xn_ref[...]                                            # (tm, D) bf16
    g = jnp.dot(xn, wg_ref[...], preferred_element_type=jnp.float32) + bg_ref[...]
    u = jnp.dot(xn, wu_ref[...], preferred_element_type=jnp.float32) + bu_ref[...]
    act = (jax.nn.silu(g) * u).astype(jnp.bfloat16)             # (tm, th)
    o_ref[...] += jnp.dot(act, wd_ref[...], preferred_element_type=jnp.float32)


def linear_kernel(x_ref, w_ref, b_ref, o_ref):
    xb = x_ref[...].astype(jnp.bfloat16)
    o_ref[...] = (jnp.dot(xb, w_ref[...], preferred_element_type=jnp.float32)
                  + b_ref[...]).astype(o_ref.dtype)


# -------------------------------- wrappers ------------------------------------

def norm_qkv(x2d, wn, wq, bq, wk, bk, wv, bv):
    M, D = x2d.shape
    tm = _row_tile(M)
    x2d, M0 = _pad_rows(x2d, tm)
    Mp = x2d.shape[0]
    tn = _col_tile(D)
    row_spec = pl.BlockSpec((tm, D), lambda i, j: (i, 0))
    w_spec = pl.BlockSpec((D, tn), lambda i, j: (0, j))
    b_spec = pl.BlockSpec((1, tn), lambda i, j: (0, j))
    full_spec = pl.BlockSpec((1, D), lambda i, j: (0, 0))
    out_spec = pl.BlockSpec((tm, tn), lambda i, j: (i, j))
    out_shape = jax.ShapeDtypeStruct((Mp, D), jnp.bfloat16)
    q, k, v = pl.pallas_call(
        norm_qkv_kernel,
        out_shape=(out_shape, out_shape, out_shape),
        grid=(Mp // tm, D // tn),
        in_specs=[row_spec, full_spec, w_spec, b_spec, w_spec, b_spec, w_spec, b_spec],
        out_specs=(out_spec, out_spec, out_spec),
        compiler_params=pltpu.CompilerParams(
            dimension_semantics=("parallel", "parallel")),
    )(x2d, wn, wq, bq, wk, bk, wv, bv)
    return q[:M0], k[:M0], v[:M0]


def attention_block(x3d, q3d, k3d, v3d, cos, sin, wo, bo, heads):
    # h = x + (RoPE-attention(q,k,v) @ Wo + bo), computed per batch in one kernel.
    B, S, D = x3d.shape
    Dh = D // heads
    qkv_spec = pl.BlockSpec((1, S, D), lambda b: (b, 0, 0))
    cs_spec = pl.BlockSpec((S, Dh), lambda b: (0, 0))
    w_spec = pl.BlockSpec((D, D), lambda b: (0, 0))
    b_spec = pl.BlockSpec((1, D), lambda b: (0, 0))
    kernel = functools.partial(attn_rope_oproj_kernel, heads=heads,
                               scale=1.0 / math.sqrt(Dh))
    return pl.pallas_call(
        kernel,
        out_shape=jax.ShapeDtypeStruct((B, S, D), jnp.float32),
        grid=(B,),
        in_specs=[qkv_spec, qkv_spec, qkv_spec, cs_spec, cs_spec,
                  qkv_spec, w_spec, b_spec],
        out_specs=qkv_spec,
        compiler_params=pltpu.CompilerParams(dimension_semantics=("parallel",)),
    )(q3d, k3d, v3d, cos, sin, x3d, wo, bo)


def norm_mlp(h2d, wn, wg, bg, wu, bu, wd, bd):
    M, D = h2d.shape
    H = wg.shape[1]
    tm = _row_tile(M)
    h2d, M0 = _pad_rows(h2d, tm)
    Mp = h2d.shape[0]
    th = _col_tile(H)
    out = pl.pallas_call(
        norm_mlp_kernel,
        out_shape=jax.ShapeDtypeStruct((Mp, D), jnp.float32),
        grid=(Mp // tm, H // th),
        in_specs=[pl.BlockSpec((tm, D), lambda i, c: (i, 0)),
                  pl.BlockSpec((1, D), lambda i, c: (0, 0)),
                  pl.BlockSpec((D, th), lambda i, c: (0, c)),
                  pl.BlockSpec((1, th), lambda i, c: (0, c)),
                  pl.BlockSpec((D, th), lambda i, c: (0, c)),
                  pl.BlockSpec((1, th), lambda i, c: (0, c)),
                  pl.BlockSpec((th, D), lambda i, c: (c, 0)),
                  pl.BlockSpec((1, D), lambda i, c: (0, 0))],
        out_specs=pl.BlockSpec((tm, D), lambda i, c: (i, 0)),
        scratch_shapes=[pltpu.VMEM((tm, D), jnp.bfloat16)],
        compiler_params=pltpu.CompilerParams(
            dimension_semantics=("parallel", "arbitrary")),
    )(h2d, wn, wg, bg, wu, bu, wd, bd)
    return out[:M0]


def linear(x2d, w, b):
    M, K = x2d.shape
    N = w.shape[1]
    tm = _row_tile(M)
    x2d, M0 = _pad_rows(x2d, tm)
    Mp = x2d.shape[0]
    tn = _col_tile(N)
    out = pl.pallas_call(
        linear_kernel,
        out_shape=jax.ShapeDtypeStruct((Mp, N), jnp.float32),
        grid=(Mp // tm, N // tn),
        in_specs=[pl.BlockSpec((tm, K), lambda i, j: (i, 0)),
                  pl.BlockSpec((K, tn), lambda i, j: (0, j)),
                  pl.BlockSpec((1, tn), lambda i, j: (0, j))],
        out_specs=pl.BlockSpec((tm, tn), lambda i, j: (i, j)),
        compiler_params=pltpu.CompilerParams(
            dimension_semantics=("parallel", "parallel")),
    )(x2d, w, b)
    return out[:M0]


# ------------------------------ RoPE tables ------------------------------------

def rope_cos_sin(S, Dh):
    inv_freq = 1.0 / (10000.0 ** (jnp.arange(0, Dh, 2, dtype=jnp.float32) / Dh))
    t = jnp.arange(S, dtype=jnp.float32)
    freqs = jnp.outer(t, inv_freq)                              # (S, Dh/2)
    emb = jnp.concatenate([freqs, freqs], axis=-1)              # (S, Dh)
    return jnp.cos(emb), jnp.sin(emb)


# -------------------------------- model ----------------------------------------

def init_params(key, *, vocab, dim, heads, expansion, layers):
    hidden = dim * expansion
    ks = iter(jax.random.split(key, 4 + layers * 16))

    def w(shape, scale=0.02, dtype=jnp.bfloat16):
        return (scale * jax.random.normal(next(ks), shape)).astype(dtype)

    params = {
        "embed": w((vocab, dim), dtype=jnp.float32),
        "w_out": w((dim, vocab)),
        "b_out": jnp.zeros((1, vocab), jnp.float32),
        "blocks": [],
    }
    for _ in range(layers):
        blk = {
            "mha_norm_w": jnp.ones((1, dim), jnp.float32),
            "wq": w((dim, dim)), "bq": jnp.zeros((1, dim), jnp.float32),
            "wk": w((dim, dim)), "bk": jnp.zeros((1, dim), jnp.float32),
            "wv": w((dim, dim)), "bv": jnp.zeros((1, dim), jnp.float32),
            "wo": w((dim, dim)), "bo": jnp.zeros((1, dim), jnp.float32),
            "ffn_norm_w": jnp.ones((1, dim), jnp.float32),
            "wg": w((dim, hidden)), "bg": jnp.zeros((1, hidden), jnp.float32),
            "wu": w((dim, hidden)), "bu": jnp.zeros((1, hidden), jnp.float32),
            "wd": w((hidden, dim)), "bd": jnp.zeros((1, dim), jnp.float32),
        }
        params["blocks"].append(blk)
    return params


def llama_kinda_forward(params, tokens, *, heads):
    # TODO(synk): embedding gather stays in plain JAX (data-dependent row lookup).
    x = params["embed"][tokens]                                 # (B, S, D) f32
    B, S, D = x.shape
    Dh = D // heads
    cos, sin = rope_cos_sin(S, Dh)

    for lp in params["blocks"]:
        x2d = x.reshape(B * S, D)
        # --- MHA sub-block: h = x + o_proj(attn(rope(qkv(rmsnorm(x))))) ---
        q, k, v = norm_qkv(x2d, lp["mha_norm_w"],
                           lp["wq"], lp["bq"], lp["wk"], lp["bk"], lp["wv"], lp["bv"])
        h = attention_block(x, q.reshape(B, S, D), k.reshape(B, S, D),
                            v.reshape(B, S, D), cos, sin,
                            lp["wo"], lp["bo"], heads)          # (B, S, D) f32
        # --- FFN sub-block: out = h + ffn(rmsnorm(h)) ---
        out2d = norm_mlp(h.reshape(B * S, D), lp["ffn_norm_w"],
                         lp["wg"], lp["bg"], lp["wu"], lp["bu"], lp["wd"], lp["bd"])
        x = out2d.reshape(B, S, D)

    logits = linear(x.reshape(B * S, D), params["w_out"], params["b_out"])
    return logits.reshape(B, S, -1)


# --------------------------------- main -----------------------------------------

if __name__ == "__main__":
    # Small config consistent with LlamaConfig:
    # dim=32, max_cntx=16, num_heads=4, act_fn=SiLU, expansion_factor=2,
    # num_layers=2, vocab_size=64; batch=2, seq=8.
    B, S = 2, 8
    DIM, HEADS, EXP, LAYERS, VOCAB = 32, 4, 2, 2, 64

    key = jax.random.PRNGKey(0)
    pkey, tkey = jax.random.split(key)
    params = init_params(pkey, vocab=VOCAB, dim=DIM, heads=HEADS,
                         expansion=EXP, layers=LAYERS)
    tokens = jax.random.randint(tkey, (B, S), 0, VOCAB, dtype=jnp.int32)

    fwd = jax.jit(functools.partial(llama_kinda_forward, heads=HEADS))
    logits = fwd(params, tokens)
    jax.block_until_ready(logits)

    assert logits.shape == (B, S, VOCAB)
    assert bool(jnp.all(jnp.isfinite(logits)))
    print("KERNEL_OK")
</pallas_src>

<mosaic_0001>
module attributes {stable_mosaic.version = 11 : i64} {
  func.func @norm_qkv_kernel(%arg0: i32, %arg1: i32, %arg2: memref<16x32xf32, #tpu.memory_space<vmem>>, %arg3: memref<1x32xf32, #tpu.memory_space<vmem>>, %arg4: memref<32x32xbf16, #tpu.memory_space<vmem>>, %arg5: memref<1x32xf32, #tpu.memory_space<vmem>>, %arg6: memref<32x32xbf16, #tpu.memory_space<vmem>>, %arg7: memref<1x32xf32, #tpu.memory_space<vmem>>, %arg8: memref<32x32xbf16, #tpu.memory_space<vmem>>, %arg9: memref<1x32xf32, #tpu.memory_space<vmem>>, %arg10: memref<16x32xbf16, #tpu.memory_space<vmem>>, %arg11: memref<16x32xbf16, #tpu.memory_space<vmem>>, %arg12: memref<16x32xbf16, #tpu.memory_space<vmem>>) attributes {dimension_semantics = [#tpu.dimension_semantics<parallel>, #tpu.dimension_semantics<parallel>], iteration_bounds = array<i64: 1, 1>, scalar_prefetch = 0 : i64, scratch_operands = 0 : i64, tpu.core_type = #tpu.core_type<tc>, window_params = [{transform_indices = @transform_0, window_bounds = array<i64: 16, 32>}, {pipeline_mode = #tpu.pipeline_mode<synchronous>, transform_indices = @transform_1, window_bounds = array<i64: 1, 32>}, {transform_indices = @transform_2, window_bounds = array<i64: 32, 32>}, {transform_indices = @transform_3, window_bounds = array<i64: 1, 32>}, {transform_indices = @transform_4, window_bounds = array<i64: 32, 32>}, {transform_indices = @transform_5, window_bounds = array<i64: 1, 32>}, {transform_indices = @transform_6, window_bounds = array<i64: 32, 32>}, {transform_indices = @transform_7, window_bounds = array<i64: 1, 32>}, {transform_indices = @transform_8, window_bounds = array<i64: 16, 32>}, {transform_indices = @transform_9, window_bounds = array<i64: 16, 32>}, {transform_indices = @transform_10, window_bounds = array<i64: 16, 32>}]} {
    %c0 = arith.constant 0 : index
    %c0_0 = arith.constant 0 : index
    %0 = vector.load %arg2[%c0, %c0_0] : memref<16x32xf32, #tpu.memory_space<vmem>>, vector<16x32xf32>
    %c0_1 = arith.constant 0 : index
    %c0_2 = arith.constant 0 : index
    %1 = vector.load %arg3[%c0_1, %c0_2] : memref<1x32xf32, #tpu.memory_space<vmem>>, vector<1x32xf32>
    %2 = arith.mulf %0, %0 : vector<16x32xf32>
    %cst = arith.constant dense<0.000000e+00> : vector<16xf32>
    %3 = vector.multi_reduction <add>, %2, %cst [1] : vector<16x32xf32> to vector<16xf32>
    %4 = vector.shape_cast %3 : vector<16xf32> to vector<16x1xf32>
    %cst_3 = arith.constant 3.200000e+01 : f32
    %5 = vector.broadcast %cst_3 : f32 to vector<16x1xf32>
    %6 = arith.divf %4, %5 : vector<16x1xf32>
    %cst_4 = arith.constant 9.99999997E-7 : f32
    %7 = vector.broadcast %cst_4 : f32 to vector<16x1xf32>
    %8 = arith.addf %6, %7 : vector<16x1xf32>
    %9 = math.rsqrt %8 : vector<16x1xf32>
    %10 = vector.broadcast %9 : vector<16x1xf32> to vector<16x32xf32>
    %11 = arith.mulf %0, %10 : vector<16x32xf32>
    %12 = vector.broadcast %1 : vector<1x32xf32> to vector<16x32xf32>
    %13 = arith.mulf %11, %12 : vector<16x32xf32>
    %14 = arith.truncf %13 : vector<16x32xf32> to vector<16x32xbf16>
    %c0_5 = arith.constant 0 : index
    %c0_6 = arith.constant 0 : index
    %15 = vector.load %arg4[%c0_5, %c0_6] : memref<32x32xbf16, #tpu.memory_space<vmem>>, vector<32x32xbf16>
    %cst_7 = arith.constant dense<0.000000e+00> : vector<16x32xf32>
    %16 = tpu.matmul %14, %15, %cst_7 {dimension_numbers = #tpu.dot_dimension_numbers<[1], [0], [0], [1], [0, 0, 1, 1], [], []>} : vector<16x32xbf16>, vector<32x32xbf16>, vector<16x32xf32> -> vector<16x32xf32>
    %c0_8 = arith.constant 0 : index
    %c0_9 = arith.constant 0 : index
    %17 = vector.load %arg5[%c0_8, %c0_9] : memref<1x32xf32, #tpu.memory_space<vmem>>, vector<1x32xf32>
    %18 = vector.broadcast %17 : vector<1x32xf32> to vector<16x32xf32>
    %19 = arith.addf %16, %18 : vector<16x32xf32>
    %20 = arith.truncf %19 : vector<16x32xf32> to vector<16x32xbf16>
    %c0_10 = arith.constant 0 : index
    %c0_11 = arith.constant 0 : index
    %21 = vector.load %arg10[%c0_10, %c0_11] : memref<16x32xbf16, #tpu.memory_space<vmem>>, vector<16x32xbf16>
    tpu.vector_store %arg10[%c0_10, %c0_11], %20 {strides = array<i32>} : memref<16x32xbf16, #tpu.memory_space<vmem>>, vector<16x32xbf16>,
    %c0_12 = arith.constant 0 : index
    %c0_13 = arith.constant 0 : index
    %22 = vector.load %arg6[%c0_12, %c0_13] : memref<32x32xbf16, #tpu.memory_space<vmem>>, vector<32x32xbf16>
    %cst_14 = arith.constant dense<0.000000e+00> : vector<16x32xf32>
    %23 = tpu.matmul %14, %22, %cst_14 {dimension_numbers = #tpu.dot_dimension_numbers<[1], [0], [0], [1], [0, 0, 1, 1], [], []>} : vector<16x32xbf16>, vector<32x32xbf16>, vector<16x32xf32> -> vector<16x32xf32>
    %c0_15 = arith.constant 0 : index
    %c0_16 = arith.constant 0 : index
    %24 = vector.load %arg7[%c0_15, %c0_16] : memref<1x32xf32, #tpu.memory_space<vmem>>, vector<1x32xf32>
    %25 = vector.broadcast %24 : vector<1x32xf32> to vector<16x32xf32>
    %26 = arith.addf %23, %25 : vector<16x32xf32>
    %27 = arith.truncf %26 : vector<16x32xf32> to vector<16x32xbf16>
    %c0_17 = arith.constant 0 : index
    %c0_18 = arith.constant 0 : index
    %28 = vector.load %arg11[%c0_17, %c0_18] : memref<16x32xbf16, #tpu.memory_space<vmem>>, vector<16x32xbf16>
    tpu.vector_store %arg11[%c0_17, %c0_18], %27 {strides = array<i32>} : memref<16x32xbf16, #tpu.memory_space<vmem>>, vector<16x32xbf16>,
    %c0_19 = arith.constant 0 : index
    %c0_20 = arith.constant 0 : index
    %29 = vector.load %arg8[%c0_19, %c0_20] : memref<32x32xbf16, #tpu.memory_space<vmem>>, vector<32x32xbf16>
    %cst_21 = arith.constant dense<0.000000e+00> : vector<16x32xf32>
    %30 = tpu.matmul %14, %29, %cst_21 {dimension_numbers = #tpu.dot_dimension_numbers<[1], [0], [0], [1], [0, 0, 1, 1], [], []>} : vector<16x32xbf16>, vector<32x32xbf16>, vector<16x32xf32> -> vector<16x32xf32>
    %c0_22 = arith.constant 0 : index
    %c0_23 = arith.constant 0 : index
    %31 = vector.load %arg9[%c0_22, %c0_23] : memref<1x32xf32, #tpu.memory_space<vmem>>, vector<1x32xf32>
    %32 = vector.broadcast %31 : vector<1x32xf32> to vector<16x32xf32>
    %33 = arith.addf %30, %32 : vector<16x32xf32>
    %34 = arith.truncf %33 : vector<16x32xf32> to vector<16x32xbf16>
    %c0_24 = arith.constant 0 : index
    %c0_25 = arith.constant 0 : index
    %35 = vector.load %arg12[%c0_24, %c0_25] : memref<16x32xbf16, #tpu.memory_space<vmem>>, vector<16x32xbf16>
    tpu.vector_store %arg12[%c0_24, %c0_25], %34 {strides = array<i32>} : memref<16x32xbf16, #tpu.memory_space<vmem>>, vector<16x32xbf16>,
    return
  }
  func.func @transform_0(%arg0: i32, %arg1: i32) -> (i32, i32) {
    %c0_i32 = arith.constant 0 : i32
    %c0_i32_0 = arith.constant 0 : i32
    return %arg0, %c0_i32 : i32, i32
  }
  func.func @transform_1(%arg0: i32, %arg1: i32) -> (i32, i32) {
    %c0_i32 = arith.constant 0 : i32
    %c0_i32_0 = arith.constant 0 : i32
    %c0_i32_1 = arith.constant 0 : i32
    return %c0_i32, %c0_i32_0 : i32, i32
  }
  func.func @transform_2(%arg0: i32, %arg1: i32) -> (i32, i32) {
    %c0_i32 = arith.constant 0 : i32
    %c0_i32_0 = arith.constant 0 : i32
    return %c0_i32, %arg1 : i32, i32
  }
  func.func @transform_3(%arg0: i32, %arg1: i32) -> (i32, i32) {
    %c0_i32 = arith.constant 0 : i32
    %c0_i32_0 = arith.constant 0 : i32
    return %c0_i32, %arg1 : i32, i32
  }
  func.func @transform_4(%arg0: i32, %arg1: i32) -> (i32, i32) {
    %c0_i32 = arith.constant 0 : i32
    %c0_i32_0 = arith.constant 0 : i32
    return %c0_i32, %arg1 : i32, i32
  }
  func.func @transform_5(%arg0: i32, %arg1: i32) -> (i32, i32) {
    %c0_i32 = arith.constant 0 : i32
    %c0_i32_0 = arith.constant 0 : i32
    return %c0_i32, %arg1 : i32, i32
  }
  func.func @transform_6(%arg0: i32, %arg1: i32) -> (i32, i32) {
    %c0_i32 = arith.constant 0 : i32
    %c0_i32_0 = arith.constant 0 : i32
    return %c0_i32, %arg1 : i32, i32
  }
  func.func @transform_7(%arg0: i32, %arg1: i32) -> (i32, i32) {
    %c0_i32 = arith.constant 0 : i32
    %c0_i32_0 = arith.constant 0 : i32
    return %c0_i32, %arg1 : i32, i32
  }
  func.func @transform_8(%arg0: i32, %arg1: i32) -> (i32, i32) {
    %c0_i32 = arith.constant 0 : i32
    return %arg0, %arg1 : i32, i32
  }
  func.func @transform_9(%arg0: i32, %arg1: i32) -> (i32, i32) {
    %c0_i32 = arith.constant 0 : i32
    return %arg0, %arg1 : i32, i32
  }
  func.func @transform_10(%arg0: i32, %arg1: i32) -> (i32, i32) {
    %c0_i32 = arith.constant 0 : i32
    return %arg0, %arg1 : i32, i32
  }
}

module attributes {stable_mosaic.version = 11 : i64} {
  func.func @attn_rope_oproj_kernel(%arg0: i32, %arg1: memref<1x8x32xbf16, #tpu.memory_space<vmem>>, %arg2: memref<1x8x32xbf16, #tpu.memory_space<vmem>>, %arg3: memref<1x8x32xbf16, #tpu.memory_space<vmem>>, %arg4: memref<8x8xf32, #tpu.memory_space<vmem>>, %arg5: memref<8x8xf32, #tpu.memory_space<vmem>>, %arg6: memref<1x8x32xf32, #tpu.memory_space<vmem>>, %arg7: memref<32x32xbf16, #tpu.memory_space<vmem>>, %arg8: memref<1x32xf32, #tpu.memory_space<vmem>>, %arg9: memref<1x8x32xf32, #tpu.memory_space<vmem>>) attributes {dimension_semantics = [#tpu.dimension_semantics<parallel>], iteration_bounds = array<i64: 2>, scalar_prefetch = 0 : i64, scratch_operands = 0 : i64, tpu.core_type = #tpu.core_type<tc>, window_params = [{transform_indices = @transform_0, window_bounds = array<i64: 1, 8, 32>}, {transform_indices = @transform_1, window_bounds = array<i64: 1, 8, 32>}, {transform_indices = @transform_2, window_bounds = array<i64: 1, 8, 32>}, {pipeline_mode = #tpu.pipeline_mode<synchronous>, transform_indices = @transform_3, window_bounds = array<i64: 8, 8>}, {pipeline_mode = #tpu.pipeline_mode<synchronous>, transform_indices = @transform_4, window_bounds = array<i64: 8, 8>}, {transform_indices = @transform_5, window_bounds = array<i64: 1, 8, 32>}, {pipeline_mode = #tpu.pipeline_mode<synchronous>, transform_indices = @transform_6, window_bounds = array<i64: 32, 32>}, {pipeline_mode = #tpu.pipeline_mode<synchronous>, transform_indices = @transform_7, window_bounds = array<i64: 1, 32>}, {transform_indices = @transform_8, window_bounds = array<i64: 1, 8, 32>}]} {
    %c0 = arith.constant 0 : index
    %c0_0 = arith.constant 0 : index
    %c0_1 = arith.constant 0 : index
    %0 = vector.load %arg1[%c0, %c0_0, %c0_1] : memref<1x8x32xbf16, #tpu.memory_space<vmem>>, vector<1x8x32xbf16>
    %1 = vector.shape_cast %0 : vector<1x8x32xbf16> to vector<8x32xbf16>
    %2 = arith.extf %1 : vector<8x32xbf16> to vector<8x32xf32>
    %c0_2 = arith.constant 0 : index
    %c0_3 = arith.constant 0 : index
    %c0_4 = arith.constant 0 : index
    %3 = vector.load %arg2[%c0_2, %c0_3, %c0_4] : memref<1x8x32xbf16, #tpu.memory_space<vmem>>, vector<1x8x32xbf16>
    %4 = vector.shape_cast %3 : vector<1x8x32xbf16> to vector<8x32xbf16>
    %5 = arith.extf %4 : vector<8x32xbf16> to vector<8x32xf32>
    %c0_5 = arith.constant 0 : index
    %c0_6 = arith.constant 0 : index
    %c0_7 = arith.constant 0 : index
    %6 = vector.load %arg3[%c0_5, %c0_6, %c0_7] : memref<1x8x32xbf16, #tpu.memory_space<vmem>>, vector<1x8x32xbf16>
    %7 = vector.shape_cast %6 : vector<1x8x32xbf16> to vector<8x32xbf16>
    %c0_8 = arith.constant 0 : index
    %c0_9 = arith.constant 0 : index
    %8 = vector.load %arg4[%c0_8, %c0_9] : memref<8x8xf32, #tpu.memory_space<vmem>>, vector<8x8xf32>
    %c0_10 = arith.constant 0 : index
    %c0_11 = arith.constant 0 : index
    %9 = vector.load %arg5[%c0_10, %c0_11] : memref<8x8xf32, #tpu.memory_space<vmem>>, vector<8x8xf32>
    %10 = tpu.iota {dimensions = array<i32: 0>} : vector<8x8xi32>
    %11 = tpu.iota {dimensions = array<i32: 1>} : vector<8x8xi32>
    %12 = arith.cmpi sle, %11, %10 : vector<8x8xi32>
    %13 = vector.extract_strided_slice %2 {offsets = [0, 0], sizes = [8, 8], strides = [1, 1]} : vector<8x32xf32> to vector<8x8xf32>
    %14 = vector.extract_strided_slice %13 {offsets = [0, 4], sizes = [8, 4], strides = [1, 1]} : vector<8x8xf32> to vector<8x4xf32>
    %cst = arith.constant 0.000000e+00 : f32
    %15 = vector.broadcast %cst : f32 to vector<8x4xf32>
    %16 = arith.subf %15, %14 : vector<8x4xf32>
    %17 = vector.extract_strided_slice %13 {offsets = [0, 0], sizes = [8, 4], strides = [1, 1]} : vector<8x8xf32> to vector<8x4xf32>
    %18 = tpu.concatenate %16, %17 in 1 : vector<8x4xf32>, vector<8x4xf32> -> vector<8x8xf32>
    %19 = arith.mulf %13, %8 : vector<8x8xf32>
    %20 = arith.mulf %18, %9 : vector<8x8xf32>
    %21 = arith.addf %19, %20 : vector<8x8xf32>
    %22 = arith.truncf %21 : vector<8x8xf32> to vector<8x8xbf16>
    %23 = vector.extract_strided_slice %5 {offsets = [0, 0], sizes = [8, 8], strides = [1, 1]} : vector<8x32xf32> to vector<8x8xf32>
    %24 = vector.extract_strided_slice %23 {offsets = [0, 4], sizes = [8, 4], strides = [1, 1]} : vector<8x8xf32> to vector<8x4xf32>
    %cst_12 = arith.constant 0.000000e+00 : f32
    %25 = vector.broadcast %cst_12 : f32 to vector<8x4xf32>
    %26 = arith.subf %25, %24 : vector<8x4xf32>
    %27 = vector.extract_strided_slice %23 {offsets = [0, 0], sizes = [8, 4], strides = [1, 1]} : vector<8x8xf32> to vector<8x4xf32>
    %28 = tpu.concatenate %26, %27 in 1 : vector<8x4xf32>, vector<8x4xf32> -> vector<8x8xf32>
    %29 = arith.mulf %23, %8 : vector<8x8xf32>
    %30 = arith.mulf %28, %9 : vector<8x8xf32>
    %31 = arith.addf %29, %30 : vector<8x8xf32>
    %32 = arith.truncf %31 : vector<8x8xf32> to vector<8x8xbf16>
    %33 = vector.extract_strided_slice %7 {offsets = [0, 0], sizes = [8, 8], strides = [1, 1]} : vector<8x32xbf16> to vector<8x8xbf16>
    %cst_13 = arith.constant dense<0.000000e+00> : vector<8x8xf32>
    %34 = tpu.matmul %22, %32, %cst_13 {dimension_numbers = #tpu.dot_dimension_numbers<[1], [1], [0], [0], [0, 0, 1, 0], [], []>} : vector<8x8xbf16>, vector<8x8xbf16>, vector<8x8xf32> -> vector<8x8xf32>
    %cst_14 = arith.constant 0.353553385 : f32
    %35 = vector.broadcast %cst_14 : f32 to vector<8x8xf32>
    %36 = arith.mulf %34, %35 : vector<8x8xf32>
    %cst_15 = arith.constant -1.000000e+30 : f32
    %37 = vector.broadcast %cst_15 : f32 to vector<8x8xf32>
    %38 = arith.select %12, %36, %37 : vector<8x8xi1>, vector<8x8xf32>
    %cst_16 = arith.constant dense<0xFF800000> : vector<8xf32>
    %39 = vector.multi_reduction <maximumf>, %38, %cst_16 [1] : vector<8x8xf32> to vector<8xf32>
    %40 = vector.shape_cast %39 : vector<8xf32> to vector<8x1xf32>
    %41 = vector.broadcast %40 : vector<8x1xf32> to vector<8x8xf32>
    %42 = arith.subf %38, %41 : vector<8x8xf32>
    %43 = math.exp %42 : vector<8x8xf32>
    %cst_17 = arith.constant dense<0.000000e+00> : vector<8xf32>
    %44 = vector.multi_reduction <add>, %43, %cst_17 [1] : vector<8x8xf32> to vector<8xf32>
    %45 = vector.shape_cast %44 : vector<8xf32> to vector<8x1xf32>
    %46 = tpu.reciprocal %45 {approx = true} : vector<8x1xf32> -> vector<8x1xf32>
    %47 = vector.broadcast %46 : vector<8x1xf32> to vector<8x8xf32>
    %48 = arith.mulf %43, %47 : vector<8x8xf32>
    %49 = arith.truncf %48 : vector<8x8xf32> to vector<8x8xbf16>
    %cst_18 = arith.constant dense<0.000000e+00> : vector<8x8xf32>
    %50 = tpu.matmul %49, %33, %cst_18 {dimension_numbers = #tpu.dot_dimension_numbers<[1], [0], [0], [1], [0, 0, 1, 1], [], []>} : vector<8x8xbf16>, vector<8x8xbf16>, vector<8x8xf32> -> vector<8x8xf32>
    %51 = vector.extract_strided_slice %2 {offsets = [0, 8], sizes = [8, 8], strides = [1, 1]} : vector<8x32xf32> to vector<8x8xf32>
    %52 = vector.extract_strided_slice %51 {offsets = [0, 4], sizes = [8, 4], strides = [1, 1]} : vector<8x8xf32> to vector<8x4xf32>
    %cst_19 = arith.constant 0.000000e+00 : f32
    %53 = vector.broadcast %cst_19 : f32 to vector<8x4xf32>
    %54 = arith.subf %53, %52 : vector<8x4xf32>
    %55 = vector.extract_strided_slice %51 {offsets = [0, 0], sizes = [8, 4], strides = [1, 1]} : vector<8x8xf32> to vector<8x4xf32>
    %56 = tpu.concatenate %54, %55 in 1 : vector<8x4xf32>, vector<8x4xf32> -> vector<8x8xf32>
    %57 = arith.mulf %51, %8 : vector<8x8xf32>
    %58 = arith.mulf %56, %9 : vector<8x8xf32>
    %59 = arith.addf %57, %58 : vector<8x8xf32>
    %60 = arith.truncf %59 : vector<8x8xf32> to vector<8x8xbf16>
    %61 = vector.extract_strided_slice %5 {offsets = [0, 8], sizes = [8, 8], strides = [1, 1]} : vector<8x32xf32> to vector<8x8xf32>
    %62 = vector.extract_strided_slice %61 {offsets = [0, 4], sizes = [8, 4], strides = [1, 1]} : vector<8x8xf32> to vector<8x4xf32>
    %cst_20 = arith.constant 0.000000e+00 : f32
    %63 = vector.broadcast %cst_20 : f32 to vector<8x4xf32>
    %64 = arith.subf %63, %62 : vector<8x4xf32>
    %65 = vector.extract_strided_slice %61 {offsets = [0, 0], sizes = [8, 4], strides = [1, 1]} : vector<8x8xf32> to vector<8x4xf32>
    %66 = tpu.concatenate %64, %65 in 1 : vector<8x4xf32>, vector<8x4xf32> -> vector<8x8xf32>
    %67 = arith.mulf %61, %8 : vector<8x8xf32>
    %68 = arith.mulf %66, %9 : vector<8x8xf32>
    %69 = arith.addf %67, %68 : vector<8x8xf32>
    %70 = arith.truncf %69 : vector<8x8xf32> to vector<8x8xbf16>
    %71 = vector.extract_strided_slice %7 {offsets = [0, 8], sizes = [8, 8], strides = [1, 1]} : vector<8x32xbf16> to vector<8x8xbf16>
    %cst_21 = arith.constant dense<0.000000e+00> : vector<8x8xf32>
    %72 = tpu.matmul %60, %70, %cst_21 {dimension_numbers = #tpu.dot_dimension_numbers<[1], [1], [0], [0], [0, 0, 1, 0], [], []>} : vector<8x8xbf16>, vector<8x8xbf16>, vector<8x8xf32> -> vector<8x8xf32>
    %cst_22 = arith.constant 0.353553385 : f32
    %73 = vector.broadcast %cst_22 : f32 to vector<8x8xf32>
    %74 = arith.mulf %72, %73 : vector<8x8xf32>
    %cst_23 = arith.constant -1.000000e+30 : f32
    %75 = vector.broadcast %cst_23 : f32 to vector<8x8xf32>
    %76 = arith.select %12, %74, %75 : vector<8x8xi1>, vector<8x8xf32>
    %cst_24 = arith.constant dense<0xFF800000> : vector<8xf32>
    %77 = vector.multi_reduction <maximumf>, %76, %cst_24 [1] : vector<8x8xf32> to vector<8xf32>
    %78 = vector.shape_cast %77 : vector<8xf32> to vector<8x1xf32>
    %79 = vector.broadcast %78 : vector<8x1xf32> to vector<8x8xf32>
    %80 = arith.subf %76, %79 : vector<8x8xf32>
    %81 = math.exp %80 : vector<8x8xf32>
    %cst_25 = arith.constant dense<0.000000e+00> : vector<8xf32>
    %82 = vector.multi_reduction <add>, %81, %cst_25 [1] : vector<8x8xf32> to vector<8xf32>
    %83 = vector.shape_cast %82 : vector<8xf32> to vector<8x1xf32>
    %84 = tpu.reciprocal %83 {approx = true} : vector<8x1xf32> -> vector<8x1xf32>
    %85 = vector.broadcast %84 : vector<8x1xf32> to vector<8x8xf32>
    %86 = arith.mulf %81, %85 : vector<8x8xf32>
    %87 = arith.truncf %86 : vector<8x8xf32> to vector<8x8xbf16>
    %cst_26 = arith.constant dense<0.000000e+00> : vector<8x8xf32>
    %88 = tpu.matmul %87, %71, %cst_26 {dimension_numbers = #tpu.dot_dimension_numbers<[1], [0], [0], [1], [0, 0, 1, 1], [], []>} : vector<8x8xbf16>, vector<8x8xbf16>, vector<8x8xf32> -> vector<8x8xf32>
    %89 = vector.extract_strided_slice %2 {offsets = [0, 16], sizes = [8, 8], strides = [1, 1]} : vector<8x32xf32> to vector<8x8xf32>
    %90 = vector.extract_strided_slice %89 {offsets = [0, 4], sizes = [8, 4], strides = [1, 1]} : vector<8x8xf32> to vector<8x4xf32>
    %cst_27 = arith.constant 0.000000e+00 : f32
    %91 = vector.broadcast %cst_27 : f32 to vector<8x4xf32>
    %92 = arith.subf %91, %90 : vector<8x4xf32>
    %93 = vector.extract_strided_slice %89 {offsets = [0, 0], sizes = [8, 4], strides = [1, 1]} : vector<8x8xf32> to vector<8x4xf32>
    %94 = tpu.concatenate %92, %93 in 1 : vector<8x4xf32>, vector<8x4xf32> -> vector<8x8xf32>
    %95 = arith.mulf %89, %8 : vector<8x8xf32>
    %96 = arith.mulf %94, %9 : vector<8x8xf32>
    %97 = arith.addf %95, %96 : vector<8x8xf32>
    %98 = arith.truncf %97 : vector<8x8xf32> to vector<8x8xbf16>
    %99 = vector.extract_strided_slice %5 {offsets = [0, 16], sizes = [8, 8], strides = [1, 1]} : vector<8x32xf32> to vector<8x8xf32>
    %100 = vector.extract_strided_slice %99 {offsets = [0, 4], sizes = [8, 4], strides = [1, 1]} : vector<8x8xf32> to vector<8x4xf32>
    %cst_28 = arith.constant 0.000000e+00 : f32
    %101 = vector.broadcast %cst_28 : f32 to vector<8x4xf32>
    %102 = arith.subf %101, %100 : vector<8x4xf32>
    %103 = vector.extract_strided_slice %99 {offsets = [0, 0], sizes = [8, 4], strides = [1, 1]} : vector<8x8xf32> to vector<8x4xf32>
    %104 = tpu.concatenate %102, %103 in 1 : vector<8x4xf32>, vector<8x4xf32> -> vector<8x8xf32>
    %105 = arith.mulf %99, %8 : vector<8x8xf32>
    %106 = arith.mulf %104, %9 : vector<8x8xf32>
    %107 = arith.addf %105, %106 : vector<8x8xf32>
    %108 = arith.truncf %107 : vector<8x8xf32> to vector<8x8xbf16>
    %109 = vector.extract_strided_slice %7 {offsets = [0, 16], sizes = [8, 8], strides = [1, 1]} : vector<8x32xbf16> to vector<8x8xbf16>
    %cst_29 = arith.constant dense<0.000000e+00> : vector<8x8xf32>
    %110 = tpu.matmul %98, %108, %cst_29 {dimension_numbers = #tpu.dot_dimension_numbers<[1], [1], [0], [0], [0, 0, 1, 0], [], []>} : vector<8x8xbf16>, vector<8x8xbf16>, vector<8x8xf32> -> vector<8x8xf32>
    %cst_30 = arith.constant 0.353553385 : f32
    %111 = vector.broadcast %cst_30 : f32 to vector<8x8xf32>
    %112 = arith.mulf %110, %111 : vector<8x8xf32>
    %cst_31 = arith.constant -1.000000e+30 : f32
    %113 = vector.broadcast %cst_31 : f32 to vector<8x8xf32>
    %114 = arith.select %12, %112, %113 : vector<8x8xi1>, vector<8x8xf32>
    %cst_32 = arith.constant dense<0xFF800000> : vector<8xf32>
    %115 = vector.multi_reduction <maximumf>, %114, %cst_32 [1] : vector<8x8xf32> to vector<8xf32>
    %116 = vector.shape_cast %115 : vector<8xf32> to vector<8x1xf32>
    %117 = vector.broadcast %116 : vector<8x1xf32> to vector<8x8xf32>
    %118 = arith.subf %114, %117 : vector<8x8xf32>
    %119 = math.exp %118 : vector<8x8xf32>
    %cst_33 = arith.constant dense<0.000000e+00> : vector<8xf32>
    %120 = vector.multi_reduction <add>, %119, %cst_33 [1] : vector<8x8xf32> to vector<8xf32>
    %121 = vector.shape_cast %120 : vector<8xf32> to vector<8x1xf32>
    %122 = tpu.reciprocal %121 {approx = true} : vector<8x1xf32> -> vector<8x1xf32>
    %123 = vector.broadcast %122 : vector<8x1xf32> to vector<8x8xf32>
    %124 = arith.mulf %119, %123 : vector<8x8xf32>
    %125 = arith.truncf %124 : vector<8x8xf32> to vector<8x8xbf16>
    %cst_34 = arith.constant dense<0.000000e+00> : vector<8x8xf32>
    %126 = tpu.matmul %125, %109, %cst_34 {dimension_numbers = #tpu.dot_dimension_numbers<[1], [0], [0], [1], [0, 0, 1, 1], [], []>} : vector<8x8xbf16>, vector<8x8xbf16>, vector<8x8xf32> -> vector<8x8xf32>
    %127 = vector.extract_strided_slice %2 {offsets = [0, 24], sizes = [8, 8], strides = [1, 1]} : vector<8x32xf32> to vector<8x8xf32>
    %128 = vector.extract_strided_slice %127 {offsets = [0, 4], sizes = [8, 4], strides = [1, 1]} : vector<8x8xf32> to vector<8x4xf32>
    %cst_35 = arith.constant 0.000000e+00 : f32
    %129 = vector.broadcast %cst_35 : f32 to vector<8x4xf32>
    %130 = arith.subf %129, %128 : vector<8x4xf32>
    %131 = vector.extract_strided_slice %127 {offsets = [0, 0], sizes = [8, 4], strides = [1, 1]} : vector<8x8xf32> to vector<8x4xf32>
    %132 = tpu.concatenate %130, %131 in 1 : vector<8x4xf32>, vector<8x4xf32> -> vector<8x8xf32>
    %133 = arith.mulf %127, %8 : vector<8x8xf32>
    %134 = arith.mulf %132, %9 : vector<8x8xf32>
    %135 = arith.addf %133, %134 : vector<8x8xf32>
    %136 = arith.truncf %135 : vector<8x8xf32> to vector<8x8xbf16>
    %137 = vector.extract_strided_slice %5 {offsets = [0, 24], sizes = [8, 8], strides = [1, 1]} : vector<8x32xf32> to vector<8x8xf32>
    %138 = vector.extract_strided_slice %137 {offsets = [0, 4], sizes = [8, 4], strides = [1, 1]} : vector<8x8xf32> to vector<8x4xf32>
    %cst_36 = arith.constant 0.000000e+00 : f32
    %139 = vector.broadcast %cst_36 : f32 to vector<8x4xf32>
    %140 = arith.subf %139, %138 : vector<8x4xf32>
    %141 = vector.extract_strided_slice %137 {offsets = [0, 0], sizes = [8, 4], strides = [1, 1]} : vector<8x8xf32> to vector<8x4xf32>
    %142 = tpu.concatenate %140, %141 in 1 : vector<8x4xf32>, vector<8x4xf32> -> vector<8x8xf32>
    %143 = arith.mulf %137, %8 : vector<8x8xf32>
    %144 = arith.mulf %142, %9 : vector<8x8xf32>
    %145 = arith.addf %143, %144 : vector<8x8xf32>
    %146 = arith.truncf %145 : vector<8x8xf32> to vector<8x8xbf16>
    %147 = vector.extract_strided_slice %7 {offsets = [0, 24], sizes = [8, 8], strides = [1, 1]} : vector<8x32xbf16> to vector<8x8xbf16>
    %cst_37 = arith.constant dense<0.000000e+00> : vector<8x8xf32>
    %148 = tpu.matmul %136, %146, %cst_37 {dimension_numbers = #tpu.dot_dimension_numbers<[1], [1], [0], [0], [0, 0, 1, 0], [], []>} : vector<8x8xbf16>, vector<8x8xbf16>, vector<8x8xf32> -> vector<8x8xf32>
    %cst_38 = arith.constant 0.353553385 : f32
    %149 = vector.broadcast %cst_38 : f32 to vector<8x8xf32>
    %150 = arith.mulf %148, %149 : vector<8x8xf32>
    %cst_39 = arith.constant -1.000000e+30 : f32
    %151 = vector.broadcast %cst_39 : f32 to vector<8x8xf32>
    %152 = arith.select %12, %150, %151 : vector<8x8xi1>, vector<8x8xf32>
    %cst_40 = arith.constant dense<0xFF800000> : vector<8xf32>
    %153 = vector.multi_reduction <maximumf>, %152, %cst_40 [1] : vector<8x8xf32> to vector<8xf32>
    %154 = vector.shape_cast %153 : vector<8xf32> to vector<8x1xf32>
    %155 = vector.broadcast %154 : vector<8x1xf32> to vector<8x8xf32>
    %156 = arith.subf %152, %155 : vector<8x8xf32>
    %157 = math.exp %156 : vector<8x8xf32>
    %cst_41 = arith.constant dense<0.000000e+00> : vector<8xf32>
    %158 = vector.multi_reduction <add>, %157, %cst_41 [1] : vector<8x8xf32> to vector<8xf32>
    %159 = vector.shape_cast %158 : vector<8xf32> to vector<8x1xf32>
    %160 = tpu.reciprocal %159 {approx = true} : vector<8x1xf32> -> vector<8x1xf32>
    %161 = vector.broadcast %160 : vector<8x1xf32> to vector<8x8xf32>
    %162 = arith.mulf %157, %161 : vector<8x8xf32>
    %163 = arith.truncf %162 : vector<8x8xf32> to vector<8x8xbf16>
    %cst_42 = arith.constant dense<0.000000e+00> : vector<8x8xf32>
    %164 = tpu.matmul %163, %147, %cst_42 {dimension_numbers = #tpu.dot_dimension_numbers<[1], [0], [0], [1], [0, 0, 1, 1], [], []>} : vector<8x8xbf16>, vector<8x8xbf16>, vector<8x8xf32> -> vector<8x8xf32>
    %165 = tpu.concatenate %50, %88, %126, %164 in 1 : vector<8x8xf32>, vector<8x8xf32>, vector<8x8xf32>, vector<8x8xf32> -> vector<8x32xf32>
    %166 = arith.truncf %165 : vector<8x32xf32> to vector<8x32xbf16>
    %c0_43 = arith.constant 0 : index
    %c0_44 = arith.constant 0 : index
    %167 = vector.load %arg7[%c0_43, %c0_44] : memref<32x32xbf16, #tpu.memory_space<vmem>>, vector<32x32xbf16>
    %cst_45 = arith.constant dense<0.000000e+00> : vector<8x32xf32>
    %168 = tpu.matmul %166, %167, %cst_45 {dimension_numbers = #tpu.dot_dimension_numbers<[1], [0], [0], [1], [0, 0, 1, 1], [], []>} : vector<8x32xbf16>, vector<32x32xbf16>, vector<8x32xf32> -> vector<8x32xf32>
    %c0_46 = arith.constant 0 : index
    %c0_47 = arith.constant 0 : index
    %c0_48 = arith.constant 0 : index
    %169 = vector.load %arg6[%c0_46, %c0_47, %c0_48] : memref<1x8x32xf32, #tpu.memory_space<vmem>>, vector<1x8x32xf32>
    %170 = vector.shape_cast %169 : vector<1x8x32xf32> to vector<8x32xf32>
    %171 = arith.addf %170, %168 : vector<8x32xf32>
    %c0_49 = arith.constant 0 : index
    %c0_50 = arith.constant 0 : index
    %172 = vector.load %arg8[%c0_49, %c0_50] : memref<1x32xf32, #tpu.memory_space<vmem>>, vector<1x32xf32>
    %173 = vector.broadcast %172 : vector<1x32xf32> to vector<8x32xf32>
    %174 = arith.addf %171, %173 : vector<8x32xf32>
    %c0_51 = arith.constant 0 : index
    %c0_52 = arith.constant 0 : index
    %c0_53 = arith.constant 0 : index
    %175 = vector.load %arg9[%c0_51, %c0_52, %c0_53] : memref<1x8x32xf32, #tpu.memory_space<vmem>>, vector<1x8x32xf32>
    %176 = vector.shape_cast %175 : vector<1x8x32xf32> to vector<8x32xf32>
    %177 = vector.shape_cast %174 : vector<8x32xf32> to vector<1x8x32xf32>
    tpu.vector_store %arg9[%c0_51, %c0_52, %c0_53], %177 {strides = array<i32>} : memref<1x8x32xf32, #tpu.memory_space<vmem>>, vector<1x8x32xf32>,
    return
  }
  func.func @transform_0(%arg0: i32) -> (i32, i32, i32) {
    %c0_i32 = arith.constant 0 : i32
    %c0_i32_0 = arith.constant 0 : i32
    %c0_i32_1 = arith.constant 0 : i32
    return %arg0, %c0_i32, %c0_i32_0 : i32, i32, i32
  }
  func.func @transform_1(%arg0: i32) -> (i32, i32, i32) {
    %c0_i32 = arith.constant 0 : i32
    %c0_i32_0 = arith.constant 0 : i32
    %c0_i32_1 = arith.constant 0 : i32
    return %arg0, %c0_i32, %c0_i32_0 : i32, i32, i32
  }
  func.func @transform_2(%arg0: i32) -> (i32, i32, i32) {
    %c0_i32 = arith.constant 0 : i32
    %c0_i32_0 = arith.constant 0 : i32
    %c0_i32_1 = arith.constant 0 : i32
    return %arg0, %c0_i32, %c0_i32_0 : i32, i32, i32
  }
  func.func @transform_3(%arg0: i32) -> (i32, i32) {
    %c0_i32 = arith.constant 0 : i32
    %c0_i32_0 = arith.constant 0 : i32
    %c0_i32_1 = arith.constant 0 : i32
    return %c0_i32, %c0_i32_0 : i32, i32
  }
  func.func @transform_4(%arg0: i32) -> (i32, i32) {
    %c0_i32 = arith.constant 0 : i32
    %c0_i32_0 = arith.constant 0 : i32
    %c0_i32_1 = arith.constant 0 : i32
    return %c0_i32, %c0_i32_0 : i32, i32
  }
  func.func @transform_5(%arg0: i32) -> (i32, i32, i32) {
    %c0_i32 = arith.constant 0 : i32
    %c0_i32_0 = arith.constant 0 : i32
    %c0_i32_1 = arith.constant 0 : i32
    return %arg0, %c0_i32, %c0_i32_0 : i32, i32, i32
  }
  func.func @transform_6(%arg0: i32) -> (i32, i32) {
    %c0_i32 = arith.constant 0 : i32
    %c0_i32_0 = arith.constant 0 : i32
    %c0_i32_1 = arith.constant 0 : i32
    return %c0_i32, %c0_i32_0 : i32, i32
  }
  func.func @transform_7(%arg0: i32) -> (i32, i32) {
    %c0_i32 = arith.constant 0 : i32
    %c0_i32_0 = arith.constant 0 : i32
    %c0_i32_1 = arith.constant 0 : i32
    return %c0_i32, %c0_i32_0 : i32, i32
  }
  func.func @transform_8(%arg0: i32) -> (i32, i32, i32) {
    %c0_i32 = arith.constant 0 : i32
    %c0_i32_0 = arith.constant 0 : i32
    %c0_i32_1 = arith.constant 0 : i32
    return %arg0, %c0_i32, %c0_i32_0 : i32, i32, i32
  }
}

module attributes {stable_mosaic.version = 11 : i64} {
  func.func @norm_mlp_kernel(%arg0: i32, %arg1: i32, %arg2: memref<16x32xf32, #tpu.memory_space<vmem>>, %arg3: memref<1x32xf32, #tpu.memory_space<vmem>>, %arg4: memref<32x64xbf16, #tpu.memory_space<vmem>>, %arg5: memref<1x64xf32, #tpu.memory_space<vmem>>, %arg6: memref<32x64xbf16, #tpu.memory_space<vmem>>, %arg7: memref<1x64xf32, #tpu.memory_space<vmem>>, %arg8: memref<64x32xbf16, #tpu.memory_space<vmem>>, %arg9: memref<1x32xf32, #tpu.memory_space<vmem>>, %arg10: memref<16x32xf32, #tpu.memory_space<vmem>>, %arg11: memref<16x32xbf16, #tpu.memory_space<vmem>>) attributes {dimension_semantics = [#tpu.dimension_semantics<parallel>, #tpu.dimension_semantics<arbitrary>], iteration_bounds = array<i64: 1, 1>, scalar_prefetch = 0 : i64, scratch_operands = 1 : i64, tpu.core_type = #tpu.core_type<tc>, window_params = [{transform_indices = @transform_0, window_bounds = array<i64: 16, 32>}, {pipeline_mode = #tpu.pipeline_mode<synchronous>, transform_indices = @transform_1, window_bounds = array<i64: 1, 32>}, {transform_indices = @transform_2, window_bounds = array<i64: 32, 64>}, {transform_indices = @transform_3, window_bounds = array<i64: 1, 64>}, {transform_indices = @transform_4, window_bounds = array<i64: 32, 64>}, {transform_indices = @transform_5, window_bounds = array<i64: 1, 64>}, {transform_indices = @transform_6, window_bounds = array<i64: 64, 32>}, {pipeline_mode = #tpu.pipeline_mode<synchronous>, transform_indices = @transform_7, window_bounds = array<i64: 1, 32>}, {transform_indices = @transform_8, window_bounds = array<i64: 16, 32>}]} {
    %c0_i32 = arith.constant 0 : i32
    %0 = arith.cmpi eq, %arg1, %c0_i32 : i32
    %1 = arith.extui %0 : i1 to i32
    %c0_i32_0 = arith.constant 0 : i32
    %2 = arith.cmpi ne, %1, %c0_i32_0 : i32
    scf.if %2 {
      %c0_19 = arith.constant 0 : index
      %c0_20 = arith.constant 0 : index
      %27 = vector.load %arg2[%c0_19, %c0_20] : memref<16x32xf32, #tpu.memory_space<vmem>>, vector<16x32xf32>
      %c0_21 = arith.constant 0 : index
      %c0_22 = arith.constant 0 : index
      %28 = vector.load %arg3[%c0_21, %c0_22] : memref<1x32xf32, #tpu.memory_space<vmem>>, vector<1x32xf32>
      %29 = arith.mulf %27, %27 : vector<16x32xf32>
      %cst_23 = arith.constant dense<0.000000e+00> : vector<16xf32>
      %30 = vector.multi_reduction <add>, %29, %cst_23 [1] : vector<16x32xf32> to vector<16xf32>
      %31 = vector.shape_cast %30 : vector<16xf32> to vector<16x1xf32>
      %cst_24 = arith.constant 3.200000e+01 : f32
      %32 = vector.broadcast %cst_24 : f32 to vector<16x1xf32>
      %33 = arith.divf %31, %32 : vector<16x1xf32>
      %cst_25 = arith.constant 9.99999997E-7 : f32
      %34 = vector.broadcast %cst_25 : f32 to vector<16x1xf32>
      %35 = arith.addf %33, %34 : vector<16x1xf32>
      %36 = math.rsqrt %35 : vector<16x1xf32>
      %37 = vector.broadcast %36 : vector<16x1xf32> to vector<16x32xf32>
      %38 = arith.mulf %27, %37 : vector<16x32xf32>
      %39 = vector.broadcast %28 : vector<1x32xf32> to vector<16x32xf32>
      %40 = arith.mulf %38, %39 : vector<16x32xf32>
      %41 = arith.truncf %40 : vector<16x32xf32> to vector<16x32xbf16>
      %c0_26 = arith.constant 0 : index
      %c0_27 = arith.constant 0 : index
      %42 = vector.load %arg11[%c0_26, %c0_27] : memref<16x32xbf16, #tpu.memory_space<vmem>>, vector<16x32xbf16>
      tpu.vector_store %arg11[%c0_26, %c0_27], %41 {strides = array<i32>} : memref<16x32xbf16, #tpu.memory_space<vmem>>, vector<16x32xbf16>,
      %c0_28 = arith.constant 0 : index
      %c0_29 = arith.constant 0 : index
      %43 = vector.load %arg9[%c0_28, %c0_29] : memref<1x32xf32, #tpu.memory_space<vmem>>, vector<1x32xf32>
      %44 = vector.broadcast %43 : vector<1x32xf32> to vector<16x32xf32>
      %45 = arith.addf %27, %44 : vector<16x32xf32>
      %c0_30 = arith.constant 0 : index
      %c0_31 = arith.constant 0 : index
      %46 = vector.load %arg10[%c0_30, %c0_31] : memref<16x32xf32, #tpu.memory_space<vmem>>, vector<16x32xf32>
      tpu.vector_store %arg10[%c0_30, %c0_31], %45 {strides = array<i32>} : memref<16x32xf32, #tpu.memory_space<vmem>>, vector<16x32xf32>,
    } else {
    }
    %c0 = arith.constant 0 : index
    %c0_1 = arith.constant 0 : index
    %3 = vector.load %arg11[%c0, %c0_1] : memref<16x32xbf16, #tpu.memory_space<vmem>>, vector<16x32xbf16>
    %c0_2 = arith.constant 0 : index
    %c0_3 = arith.constant 0 : index
    %4 = vector.load %arg4[%c0_2, %c0_3] : memref<32x64xbf16, #tpu.memory_space<vmem>>, vector<32x64xbf16>
    %cst = arith.constant dense<0.000000e+00> : vector<16x64xf32>
    %5 = tpu.matmul %3, %4, %cst {dimension_numbers = #tpu.dot_dimension_numbers<[1], [0], [0], [1], [0, 0, 1, 1], [], []>} : vector<16x32xbf16>, vector<32x64xbf16>, vector<16x64xf32> -> vector<16x64xf32>
    %c0_4 = arith.constant 0 : index
    %c0_5 = arith.constant 0 : index
    %6 = vector.load %arg5[%c0_4, %c0_5] : memref<1x64xf32, #tpu.memory_space<vmem>>, vector<1x64xf32>
    %7 = vector.broadcast %6 : vector<1x64xf32> to vector<16x64xf32>
    %8 = arith.addf %5, %7 : vector<16x64xf32>
    %c0_6 = arith.constant 0 : index
    %c0_7 = arith.constant 0 : index
    %9 = vector.load %arg6[%c0_6, %c0_7] : memref<32x64xbf16, #tpu.memory_space<vmem>>, vector<32x64xbf16>
    %cst_8 = arith.constant dense<0.000000e+00> : vector<16x64xf32>
    %10 = tpu.matmul %3, %9, %cst_8 {dimension_numbers = #tpu.dot_dimension_numbers<[1], [0], [0], [1], [0, 0, 1, 1], [], []>} : vector<16x32xbf16>, vector<32x64xbf16>, vector<16x64xf32> -> vector<16x64xf32>
    %c0_9 = arith.constant 0 : index
    %c0_10 = arith.constant 0 : index
    %11 = vector.load %arg7[%c0_9, %c0_10] : memref<1x64xf32, #tpu.memory_space<vmem>>, vector<1x64xf32>
    %12 = vector.broadcast %11 : vector<1x64xf32> to vector<16x64xf32>
    %13 = arith.addf %10, %12 : vector<16x64xf32>
    %14 = arith.negf %8 : vector<16x64xf32>
    %15 = math.exp %14 : vector<16x64xf32>
    %cst_11 = arith.constant 1.000000e+00 : f32
    %16 = vector.broadcast %cst_11 : f32 to vector<16x64xf32>
    %17 = arith.addf %16, %15 : vector<16x64xf32>
    %18 = arith.divf %16, %17 : vector<16x64xf32>
    %19 = arith.mulf %8, %18 : vector<16x64xf32>
    %20 = arith.mulf %19, %13 : vector<16x64xf32>
    %21 = arith.truncf %20 : vector<16x64xf32> to vector<16x64xbf16>
    %c0_12 = arith.constant 0 : index
    %c0_13 = arith.constant 0 : index
    %22 = vector.load %arg10[%c0_12, %c0_13] : memref<16x32xf32, #tpu.memory_space<vmem>>, vector<16x32xf32>
    %c0_14 = arith.constant 0 : index
    %c0_15 = arith.constant 0 : index
    %23 = vector.load %arg8[%c0_14, %c0_15] : memref<64x32xbf16, #tpu.memory_space<vmem>>, vector<64x32xbf16>
    %cst_16 = arith.constant dense<0.000000e+00> : vector<16x32xf32>
    %24 = tpu.matmul %21, %23, %cst_16 {dimension_numbers = #tpu.dot_dimension_numbers<[1], [0], [0], [1], [0, 0, 1, 1], [], []>} : vector<16x64xbf16>, vector<64x32xbf16>, vector<16x32xf32> -> vector<16x32xf32>
    %25 = arith.addf %22, %24 : vector<16x32xf32>
    %c0_17 = arith.constant 0 : index
    %c0_18 = arith.constant 0 : index
    %26 = vector.load %arg10[%c0_17, %c0_18] : memref<16x32xf32, #tpu.memory_space<vmem>>, vector<16x32xf32>
    tpu.vector_store %arg10[%c0_17, %c0_18], %25 {strides = array<i32>} : memref<16x32xf32, #tpu.memory_space<vmem>>, vector<16x32xf32>,
    return
  }
  func.func @transform_0(%arg0: i32, %arg1: i32) -> (i32, i32) {
    %c0_i32 = arith.constant 0 : i32
    %c0_i32_0 = arith.constant 0 : i32
    return %arg0, %c0_i32 : i32, i32
  }
  func.func @transform_1(%arg0: i32, %arg1: i32) -> (i32, i32) {
    %c0_i32 = arith.constant 0 : i32
    %c0_i32_0 = arith.constant 0 : i32
    %c0_i32_1 = arith.constant 0 : i32
    return %c0_i32, %c0_i32_0 : i32, i32
  }
  func.func @transform_2(%arg0: i32, %arg1: i32) -> (i32, i32) {
    %c0_i32 = arith.constant 0 : i32
    %c0_i32_0 = arith.constant 0 : i32
    return %c0_i32, %arg1 : i32, i32
  }
  func.func @transform_3(%arg0: i32, %arg1: i32) -> (i32, i32) {
    %c0_i32 = arith.constant 0 : i32
    %c0_i32_0 = arith.constant 0 : i32
    return %c0_i32, %arg1 : i32, i32
  }
  func.func @transform_4(%arg0: i32, %arg1: i32) -> (i32, i32) {
    %c0_i32 = arith.constant 0 : i32
    %c0_i32_0 = arith.constant 0 : i32
    return %c0_i32, %arg1 : i32, i32
  }
  func.func @transform_5(%arg0: i32, %arg1: i32) -> (i32, i32) {
    %c0_i32 = arith.constant 0 : i32
    %c0_i32_0 = arith.constant 0 : i32
    return %c0_i32, %arg1 : i32, i32
  }
  func.func @transform_6(%arg0: i32, %arg1: i32) -> (i32, i32) {
    %c0_i32 = arith.constant 0 : i32
    %c0_i32_0 = arith.constant 0 : i32
    return %arg1, %c0_i32 : i32, i32
  }
  func.func @transform_7(%arg0: i32, %arg1: i32) -> (i32, i32) {
    %c0_i32 = arith.constant 0 : i32
    %c0_i32_0 = arith.constant 0 : i32
    %c0_i32_1 = arith.constant 0 : i32
    return %c0_i32, %c0_i32_0 : i32, i32
  }
  func.func @transform_8(%arg0: i32, %arg1: i32) -> (i32, i32) {
    %c0_i32 = arith.constant 0 : i32
    %c0_i32_0 = arith.constant 0 : i32
    return %arg0, %c0_i32 : i32, i32
  }
}

module attributes {stable_mosaic.version = 11 : i64} {
  func.func @linear_kernel(%arg0: i32, %arg1: i32, %arg2: memref<16x32xf32, #tpu.memory_space<vmem>>, %arg3: memref<32x64xbf16, #tpu.memory_space<vmem>>, %arg4: memref<1x64xf32, #tpu.memory_space<vmem>>, %arg5: memref<16x64xf32, #tpu.memory_space<vmem>>) attributes {dimension_semantics = [#tpu.dimension_semantics<parallel>, #tpu.dimension_semantics<parallel>], iteration_bounds = array<i64: 1, 1>, scalar_prefetch = 0 : i64, scratch_operands = 0 : i64, tpu.core_type = #tpu.core_type<tc>, window_params = [{transform_indices = @transform_0, window_bounds = array<i64: 16, 32>}, {transform_indices = @transform_1, window_bounds = array<i64: 32, 64>}, {transform_indices = @transform_2, window_bounds = array<i64: 1, 64>}, {transform_indices = @transform_3, window_bounds = array<i64: 16, 64>}]} {
    %c0 = arith.constant 0 : index
    %c0_0 = arith.constant 0 : index
    %0 = vector.load %arg2[%c0, %c0_0] : memref<16x32xf32, #tpu.memory_space<vmem>>, vector<16x32xf32>
    %1 = arith.truncf %0 : vector<16x32xf32> to vector<16x32xbf16>
    %c0_1 = arith.constant 0 : index
    %c0_2 = arith.constant 0 : index
    %2 = vector.load %arg3[%c0_1, %c0_2] : memref<32x64xbf16, #tpu.memory_space<vmem>>, vector<32x64xbf16>
    %cst = arith.constant dense<0.000000e+00> : vector<16x64xf32>
    %3 = tpu.matmul %1, %2, %cst {dimension_numbers = #tpu.dot_dimension_numbers<[1], [0], [0], [1], [0, 0, 1, 1], [], []>} : vector<16x32xbf16>, vector<32x64xbf16>, vector<16x64xf32> -> vector<16x64xf32>
    %c0_3 = arith.constant 0 : index
    %c0_4 = arith.constant 0 : index
    %4 = vector.load %arg4[%c0_3, %c0_4] : memref<1x64xf32, #tpu.memory_space<vmem>>, vector<1x64xf32>
    %5 = vector.broadcast %4 : vector<1x64xf32> to vector<16x64xf32>
    %6 = arith.addf %3, %5 : vector<16x64xf32>
    %c0_5 = arith.constant 0 : index
    %c0_6 = arith.constant 0 : index
    %7 = vector.load %arg5[%c0_5, %c0_6] : memref<16x64xf32, #tpu.memory_space<vmem>>, vector<16x64xf32>
    tpu.vector_store %arg5[%c0_5, %c0_6], %6 {strides = array<i32>} : memref<16x64xf32, #tpu.memory_space<vmem>>, vector<16x64xf32>,
    return
  }
  func.func @transform_0(%arg0: i32, %arg1: i32) -> (i32, i32) {
    %c0_i32 = arith.constant 0 : i32
    %c0_i32_0 = arith.constant 0 : i32
    return %arg0, %c0_i32 : i32, i32
  }
  func.func @transform_1(%arg0: i32, %arg1: i32) -> (i32, i32) {
    %c0_i32 = arith.constant 0 : i32
    %c0_i32_0 = arith.constant 0 : i32
    return %c0_i32, %arg1 : i32, i32
  }
  func.func @transform_2(%arg0: i32, %arg1: i32) -> (i32, i32) {
    %c0_i32 = arith.constant 0 : i32
    %c0_i32_0 = arith.constant 0 : i32
    return %c0_i32, %arg1 : i32, i32
  }
  func.func @transform_3(%arg0: i32, %arg1: i32) -> (i32, i32) {
    %c0_i32 = arith.constant 0 : i32
    return %arg0, %arg1 : i32, i32
  }
}

</mosaic_0001>

<llo_original>
// kernel: llama_kinda_forward.13
$region0: #{llama_kinda_forward.13}
  #allocation0 [shape = 'u32[]', space=smem, size = 0x4, offset = 0x4, fixed_abs, tag = 'smem constant byte address 0x4 - core index']
  #allocation1 [shape = 'u32[144,128]{1,0:T(1,128)}', space=vmem, size = 0x12000, scoped, tag = 'internal scratch']
  %s0 = inlined_call_operand.vmem [shape: f32[16,32], index: 0, kind: input, shape index: {}]
  %s1 = inlined_call_operand.vmem [shape: bf16[32,64], index: 1, kind: input, shape index: {}]
  %s2 = inlined_call_operand.vmem [shape: f32[1,64], index: 2, kind: input, shape index: {}]
  %s3 = inlined_call_operand.hbm [shape: f32[16,64], index: 3, kind: output, shape index: {}]
  %s4 = sld [smem:[#allocation0]]
  $region22: #{llama_kinda_forward.13} parent=0
    _
  %s6 = ssub.s32 1, %s4
  %s7 = scalar_select 0, %s6, %s4
  $region1: #{llama_kinda_forward.13} parent=0
    #allocation2 [shape = 'u8[8192]{0}', space=vmem, size = 0x2000, scoped, tag = 'output window, operand 0, single buffered']
    #allocation3 [shape = 's32[1]{0}', space=sflag, size = 0x4, scoped, tag = 'scoped memory for llama_kinda_forward.13']
    %8 = vsyncpa [#allocation3], 0
    // Predicated region
    $region2: #{llama_kinda_forward.13} parent=1 // pred_check
      _
    $region3: #{llama_kinda_forward.13} parent=1 // pred_check_branch
      %10 = sbr.rel (0) target = $region5
    $region4: #{llama_kinda_forward.13} parent=1 // pred_region
      _
    $region5: #{llama_kinda_forward.13} parent=1 // pred_fallthru
      _
    // Predicated region
    $region6: #{llama_kinda_forward.13} parent=1 // pred_check
      _
    $region7: #{llama_kinda_forward.13} parent=1 // pred_check_branch
      %12 = sbr.rel (0) target = $region9
    $region8: #{llama_kinda_forward.13} parent=1 // pred_region
      _
    $region9: #{llama_kinda_forward.13} parent=1 // pred_fallthru
      _
    // Predicated region
    $region10: #{llama_kinda_forward.13} parent=1 // pred_check
      _
    $region11: #{llama_kinda_forward.13} parent=1 // pred_check_branch
      %14 = sbr.rel (0) target = $region13
    $region12: #{llama_kinda_forward.13} parent=1 // pred_region
      _
    $region13: #{llama_kinda_forward.13} parent=1 // pred_fallthru
      _
    %v16 = vld [vmem:[%s0] sm:$0xff]
    %v17 = vld [vmem:[%s0 + $0x8] sm:$0xff]
    %v18 = vpack.c.bf16 %v17, %v16
    %v19 = vld [vmem:[%s1] sm:$0xf]
    %v20 = vld [vmem:[%s1 + $0x4] sm:$0xf]
    %v21 = vld [vmem:[%s1 + $0x8] sm:$0xf]
    %v22 = vld [vmem:[%s1 + $0xc] sm:$0xf]
    %v23 = vld [vmem:[%s2] sm:$0x1]
    %v25 = vlaneseq
    %v26 = vshrl.u32 %v25, 7
    %v27 = vsub.s32 0, %v26
    %v28 = vrot.slane %v23, %v27
    %v34 = vunpack.c.l.b16 %v19
    %v35 = vunpack.c.l.b16 %v20
    %v36 = vunpack.c.l.b16 %v21
    %v37 = vunpack.c.l.b16 %v22
    %v38 = vpack.c.b16 %v35, %v34
    %v39 = vpack.c.b16 %v37, %v36
    %vm42 = vcmask 261120
    %v44 = vsel %vm42, %v18, 0
    %46 = vmatprep.subr.bf16.mxu0 0
    %47 = vmatpush1.bf16.msra.mxu0 0
    %48 = vmatprep.subr.bf16.mxu0 0
    %49 = vmatpush1.bf16.msra.mxu0 0
    %50 = vmatprep.subr.bf16.mxu0 0
    %51 = vmatpush1.bf16.msra.mxu0 0
    %52 = vmatprep.subr.bf16.mxu0 0
    %53 = vmatpush1.bf16.msra.mxu0 0
    %54 = vmatprep.subr.bf16.mxu0 0
    %55 = vmatpush1.bf16.msra.mxu0 0
    %56 = vmatprep.subr.bf16.mxu0 0
    %57 = vmatpush1.bf16.msra.mxu0 0
    %58 = vmatprep.subr.bf16.mxu0 0
    %59 = vmatpush1.bf16.msra.mxu0 %v39
    %60 = vmatprep.subr.bf16.mxu0 0
    %61 = vmatpush1.bf16.msra.mxu0 %v38
    %62 = vmatprep.subr.bf16.mxu0 0
    %63 = vmatpush2.bf16.msra.mxu0 0
    %64 = vmatprep.subr.bf16.mxu0 0
    %65 = vmatpush2.bf16.msra.mxu0 0
    %66 = vmatprep.subr.bf16.mxu0 0
    %67 = vmatpush2.bf16.msra.mxu0 0
    %68 = vmatprep.subr.bf16.mxu0 0
    %69 = vmatpush2.bf16.msra.mxu0 0
    %70 = vmatprep.subr.bf16.mxu0 0
    %71 = vmatpush2.bf16.msra.mxu0 0
    %72 = vmatprep.subr.bf16.mxu0 0
    %73 = vmatpush2.bf16.msra.mxu0 0
    %74 = vmatprep.subr.bf16.mxu0 0
    %75 = vmatpush2.bf16.msra.mxu0 0
    %76 = vmatprep.subr.bf16.mxu0 0
    %77 = vmatpush2.bf16.msra.mxu0 0
    %78 = vmatprep.mubr.bf16.mxu0 0
    %79 = vmatmul.mubr.bf16.gmra.mxu0 %v44
    %v80 = vpop.f32.mrf.mxu0
    %v81 = vadd.f32 %v28, %v80
    %v82 = vpop.f32.mrf.mxu0
    %v83 = vpop.f32.mrf.mxu0
    %v84 = vadd.f32 %v28, %v83
    %v85 = vpop.f32.mrf.mxu0
    %86 = vdwg.mxu0
    %vm87 = vcmask 523264
    %88 = vst.msk [vmem:[#allocation2] sm:$0xff] %vm87, %v81
    %89 = vst.msk [vmem:[#allocation2 + $0x8] sm:$0xff] %vm87, %v84
    // Predicated region
    $region14: #{llama_kinda_forward.13} parent=1 // pred_check
      _
    $region15: #{llama_kinda_forward.13} parent=1 // pred_check_branch
      %91 = sbr.rel (0) target = $region17
    $region16: #{llama_kinda_forward.13} parent=1 // pred_region
      %s93 = ssub.s32 256, 256
      %94 = vsyncadd [#allocation3], %s93
      %s95 = sshll.u32 [#allocation2], 4
      %s96 = int_to_ptr.vmem [resolvable:$true] %s95
      %101 = dma.vmem_to_hbm [thread:$0]  %s96, 256, %s3, [#allocation3], 128, 128, 8
    $region17: #{llama_kinda_forward.13} parent=1 // pred_fallthru
      _
    // Predicated region
    $region18: #{llama_kinda_forward.13} parent=1 // pred_check
      _
    $region19: #{llama_kinda_forward.13} parent=1 // pred_check_branch
      %103 = sbr.rel (0) target = $region21
    $region20: #{llama_kinda_forward.13} parent=1 // pred_region
      %104 = dma.done [#allocation3], 256
    $region21: #{llama_kinda_forward.13} parent=1 // pred_fallthru
      _
    %105 = vsyncpa [#allocation3], 1

// kernel: llama_kinda_forward.7
$region0: #{llama_kinda_forward.7}
  #allocation0 [shape = 'u32[]', space=smem, size = 0x4, offset = 0x4, fixed_abs, tag = 'smem constant byte address 0x4 - core index']
  #allocation1 [shape = 'u32[144,128]{1,0:T(1,128)}', space=vmem, size = 0x12000, scoped, tag = 'internal scratch']
  %s0 = inlined_call_operand.vmem [shape: f32[16,32], index: 0, kind: input, shape index: {}]
  %s1 = inlined_call_operand.vmem [shape: f32[1,32], index: 1, kind: input, shape index: {}]
  %s2 = inlined_call_operand.vmem [shape: bf16[32,32], index: 2, kind: input, shape index: {}]
  %s3 = inlined_call_operand.vmem [shape: f32[1,32], index: 3, kind: input, shape index: {}]
  %s4 = inlined_call_operand.vmem [shape: bf16[32,32], index: 4, kind: input, shape index: {}]
  %s5 = inlined_call_operand.vmem [shape: f32[1,32], index: 5, kind: input, shape index: {}]
  %s6 = inlined_call_operand.vmem [shape: bf16[32,32], index: 6, kind: input, shape index: {}]
  %s7 = inlined_call_operand.vmem [shape: f32[1,32], index: 7, kind: input, shape index: {}]
  %s8 = inlined_call_operand.vmem [shape: bf16[16,32], index: 8, kind: output, shape index: {0}]
  %s9 = inlined_call_operand.vmem [shape: bf16[16,32], index: 9, kind: output, shape index: {1}]
  %s10 = inlined_call_operand.vmem [shape: bf16[16,32], index: 10, kind: output, shape index: {2}]
  %11 = xla_tuple %s8, %s9, %s10
  %s12 = sld [smem:[#allocation0]]
  $region58: #{llama_kinda_forward.7} parent=0
    _
  %s14 = ssub.s32 1, %s12
  %s15 = scalar_select 0, %s14, %s12
  // Predicated region
  $region2: #{llama_kinda_forward.7} parent=0 // pred_check
    _
  $region3: #{llama_kinda_forward.7} parent=0 // pred_check_branch
    %17 = sbr.rel (0) target = $region5
  $region4: #{llama_kinda_forward.7} parent=0 // pred_region
    _
  $region5: #{llama_kinda_forward.7} parent=0 // pred_fallthru
    _
  // Predicated region
  $region6: #{llama_kinda_forward.7} parent=0 // pred_check
    _
  $region7: #{llama_kinda_forward.7} parent=0 // pred_check_branch
    %19 = sbr.rel (0) target = $region9
  $region8: #{llama_kinda_forward.7} parent=0 // pred_region
    _
  $region9: #{llama_kinda_forward.7} parent=0 // pred_fallthru
    _
  // Predicated region
  $region10: #{llama_kinda_forward.7} parent=0 // pred_check
    _
  $region11: #{llama_kinda_forward.7} parent=0 // pred_check_branch
    %21 = sbr.rel (0) target = $region13
  $region12: #{llama_kinda_forward.7} parent=0 // pred_region
    _
  $region13: #{llama_kinda_forward.7} parent=0 // pred_fallthru
    _
  // Predicated region
  $region14: #{llama_kinda_forward.7} parent=0 // pred_check
    _
  $region15: #{llama_kinda_forward.7} parent=0 // pred_check_branch
    %23 = sbr.rel (0) target = $region17
  $region16: #{llama_kinda_forward.7} parent=0 // pred_region
    _
  $region17: #{llama_kinda_forward.7} parent=0 // pred_fallthru
    _
  // Predicated region
  $region18: #{llama_kinda_forward.7} parent=0 // pred_check
    _
  $region19: #{llama_kinda_forward.7} parent=0 // pred_check_branch
    %25 = sbr.rel (0) target = $region21
  $region20: #{llama_kinda_forward.7} parent=0 // pred_region
    _
  $region21: #{llama_kinda_forward.7} parent=0 // pred_fallthru
    _
  // Predicated region
  $region22: #{llama_kinda_forward.7} parent=0 // pred_check
    _
  $region23: #{llama_kinda_forward.7} parent=0 // pred_check_branch
    %27 = sbr.rel (0) target = $region25
  $region24: #{llama_kinda_forward.7} parent=0 // pred_region
    _
  $region25: #{llama_kinda_forward.7} parent=0 // pred_fallthru
    _
  // Predicated region
  $region26: #{llama_kinda_forward.7} parent=0 // pred_check
    _
  $region27: #{llama_kinda_forward.7} parent=0 // pred_check_branch
    %29 = sbr.rel (0) target = $region29
  $region28: #{llama_kinda_forward.7} parent=0 // pred_region
    _
  $region29: #{llama_kinda_forward.7} parent=0 // pred_fallthru
    _
  // Predicated region
  $region30: #{llama_kinda_forward.7} parent=0 // pred_check
    _
  $region31: #{llama_kinda_forward.7} parent=0 // pred_check_branch
    %31 = sbr.rel (0) target = $region33
  $region32: #{llama_kinda_forward.7} parent=0 // pred_region
    _
  $region33: #{llama_kinda_forward.7} parent=0 // pred_fallthru
    _
  %v33 = vld [vmem:[%s0] sm:$0xff]
  %v34 = vld [vmem:[%s0 + $0x8] sm:$0xff]
  %v35 = vld [vmem:[%s1] sm:$0x1]
  %v36 = vmul.f32 %v33, %v33
  %v37 = vmul.f32 %v34, %v34
  %vm38 = vcmask 261120
  %v39 = vsel %vm38, %v36, 0.0
  %40 = vadd.xlane.f32.xlu0 %v39
  %v41 = vpop.xlane.xlu0 %40
  %v42 = vsel %vm38, %v37, 0.0
  %43 = vadd.xlane.f32.xlu0 %v42
  %v44 = vpop.xlane.xlu0 %43
  %v45 = vrcp.pop 32.0
  %v46 = vmul.f32 %v41, %v45
  %v47 = vmul.f32 %v44, %v45
  %v48 = vadd.f32 %v46, 1e-06
  %v49 = vadd.f32 %v47, 1e-06
  %v50 = vrsqrt.pop %v48
  %v51 = vrsqrt.pop %v49
  %v52 = vmul.f32 %v33, %v50
  %v53 = vmul.f32 %v34, %v51
  %v55 = vlaneseq
  %v56 = vshrl.u32 %v55, 7
  %v57 = vsub.s32 0, %v56
  %v58 = vrot.slane %v35, %v57
  %v60 = vmul.f32 %v52, %v58
  %v61 = vmul.f32 %v53, %v58
  %v62 = vpack.c.bf16 %v61, %v60
  %v63 = vld [vmem:[%s2] sm:$0xf]
  %v64 = vld [vmem:[%s2 + $0x4] sm:$0xf]
  %v65 = vld [vmem:[%s2 + $0x8] sm:$0xf]
  %v66 = vld [vmem:[%s2 + $0xc] sm:$0xf]
  %v67 = vld [vmem:[%s3] sm:$0x1]
  %v69 = vlaneseq
  %v70 = vshrl.u32 %v69, 7
  %v71 = vsub.s32 0, %v70
  %v72 = vrot.slane %v67, %v71
  %v78 = vunpack.c.l.b16 %v63
  %v79 = vunpack.c.l.b16 %v64
  %v80 = vunpack.c.l.b16 %v65
  %v81 = vunpack.c.l.b16 %v66
  %v82 = vpack.c.b16 %v79, %v78
  %v83 = vpack.c.b16 %v81, %v80
  %v87 = vsel %vm38, %v62, 0
  %89 = vmatprep.subr.bf16.mxu0 0
  %90 = vmatpush1.bf16.msra.mxu0 0
  %91 = vmatprep.subr.bf16.mxu0 0
  %92 = vmatpush1.bf16.msra.mxu0 0
  %93 = vmatprep.subr.bf16.mxu0 0
  %94 = vmatpush1.bf16.msra.mxu0 0
  %95 = vmatprep.subr.bf16.mxu0 0
  %96 = vmatpush1.bf16.msra.mxu0 0
  %97 = vmatprep.subr.bf16.mxu0 0
  %98 = vmatpush1.bf16.msra.mxu0 0
  %99 = vmatprep.subr.bf16.mxu0 0
  %100 = vmatpush1.bf16.msra.mxu0 0
  %101 = vmatprep.subr.bf16.mxu0 0
  %102 = vmatpush1.bf16.msra.mxu0 %v83
  %103 = vmatprep.subr.bf16.mxu0 0
  %104 = vmatpush1.bf16.msra.mxu0 %v82
  %105 = vmatprep.subr.bf16.mxu0 0
  %106 = vmatpush2.bf16.msra.mxu0 0
  %107 = vmatprep.subr.bf16.mxu0 0
  %108 = vmatpush2.bf16.msra.mxu0 0
  %109 = vmatprep.subr.bf16.mxu0 0
  %110 = vmatpush2.bf16.msra.mxu0 0
  %111 = vmatprep.subr.bf16.mxu0 0
  %112 = vmatpush2.bf16.msra.mxu0 0
  %113 = vmatprep.subr.bf16.mxu0 0
  %114 = vmatpush2.bf16.msra.mxu0 0
  %115 = vmatprep.subr.bf16.mxu0 0
  %116 = vmatpush2.bf16.msra.mxu0 0
  %117 = vmatprep.subr.bf16.mxu0 0
  %118 = vmatpush2.bf16.msra.mxu0 0
  %119 = vmatprep.subr.bf16.mxu0 0
  %120 = vmatpush2.bf16.msra.mxu0 0
  %121 = vmatprep.mubr.bf16.mxu0 0
  %122 = vmatmul.mubr.bf16.gmra.mxu0 %v87
  %v123 = vpop.f32.mrf.mxu0
  %v124 = vadd.f32 %v72, %v123
  %v125 = vpop.f32.mrf.mxu0
  %v126 = vpop.f32.mrf.mxu0
  %v127 = vadd.f32 %v72, %v126
  %v128 = vpop.f32.mrf.mxu0
  %129 = vdwg.mxu0
  %v130 = vpack.c.bf16 %v127, %v124
  %v132 = vunpack.c.l.b16 %v130
  %v133 = vunpack.c.h.b16 %v130
  %v134 = vpack.c.b16 %v132, %v132
  %v135 = vpack.c.b16 %v133, %v133
  %vm138 = vcmask 257024
  %139 = vst.msk [vmem:[%s8] sm:$0xf] %vm138, %v134
  %140 = vst.msk [vmem:[%s8 + $0x4] sm:$0xf] %vm138, %v135
  %v141 = vld [vmem:[%s4] sm:$0xf]
  %v142 = vld [vmem:[%s4 + $0x4] sm:$0xf]
  %v143 = vld [vmem:[%s4 + $0x8] sm:$0xf]
  %v144 = vld [vmem:[%s4 + $0xc] sm:$0xf]
  %v145 = vld [vmem:[%s5] sm:$0x1]
  %v147 = vlaneseq
  %v148 = vshrl.u32 %v147, 7
  %v149 = vsub.s32 0, %v148
  %v150 = vrot.slane %v145, %v149
  %v156 = vunpack.c.l.b16 %v141
  %v157 = vunpack.c.l.b16 %v142
  %v158 = vunpack.c.l.b16 %v143
  %v159 = vunpack.c.l.b16 %v144
  %v160 = vpack.c.b16 %v157, %v156
  %v161 = vpack.c.b16 %v159, %v158
  %164 = vmatprep.subr.bf16.mxu0 0
  %165 = vmatpush1.bf16.msra.mxu0 0
  %166 = vmatprep.subr.bf16.mxu0 0
  %167 = vmatpush1.bf16.msra.mxu0 0
  %168 = vmatprep.subr.bf16.mxu0 0
  %169 = vmatpush1.bf16.msra.mxu0 0
  %170 = vmatprep.subr.bf16.mxu0 0
  %171 = vmatpush1.bf16.msra.mxu0 0
  %172 = vmatprep.subr.bf16.mxu0 0
  %173 = vmatpush1.bf16.msra.mxu0 0
  %174 = vmatprep.subr.bf16.mxu0 0
  %175 = vmatpush1.bf16.msra.mxu0 0
  %176 = vmatprep.subr.bf16.mxu0 0
  %177 = vmatpush1.bf16.msra.mxu0 %v161
  %178 = vmatprep.subr.bf16.mxu0 0
  %179 = vmatpush1.bf16.msra.mxu0 %v160
  %180 = vmatprep.subr.bf16.mxu0 0
  %181 = vmatpush2.bf16.msra.mxu0 0
  %182 = vmatprep.subr.bf16.mxu0 0
  %183 = vmatpush2.bf16.msra.mxu0 0
  %184 = vmatprep.subr.bf16.mxu0 0
  %185 = vmatpush2.bf16.msra.mxu0 0
  %186 = vmatprep.subr.bf16.mxu0 0
  %187 = vmatpush2.bf16.msra.mxu0 0
  %188 = vmatprep.subr.bf16.mxu0 0
  %189 = vmatpush2.bf16.msra.mxu0 0
  %190 = vmatprep.subr.bf16.mxu0 0
  %191 = vmatpush2.bf16.msra.mxu0 0
  %192 = vmatprep.subr.bf16.mxu0 0
  %193 = vmatpush2.bf16.msra.mxu0 0
  %194 = vmatprep.subr.bf16.mxu0 0
  %195 = vmatpush2.bf16.msra.mxu0 0
  %196 = vmatprep.mubr.bf16.mxu0 0
  %197 = vmatmul.mubr.bf16.gmra.mxu0 %v87
  %v198 = vpop.f32.mrf.mxu0
  %v199 = vadd.f32 %v150, %v198
  %v200 = vpop.f32.mrf.mxu0
  %v201 = vpop.f32.mrf.mxu0
  %v202 = vadd.f32 %v150, %v201
  %v203 = vpop.f32.mrf.mxu0
  %204 = vdwg.mxu0
  %v205 = vpack.c.bf16 %v202, %v199
  %v207 = vunpack.c.l.b16 %v205
  %v208 = vunpack.c.h.b16 %v205
  %v209 = vpack.c.b16 %v207, %v207
  %v210 = vpack.c.b16 %v208, %v208
  %213 = vst.msk [vmem:[%s9] sm:$0xf] %vm138, %v209
  %214 = vst.msk [vmem:[%s9 + $0x4] sm:$0xf] %vm138, %v210
  %v215 = vld [vmem:[%s6] sm:$0xf]
  %v216 = vld [vmem:[%s6 + $0x4] sm:$0xf]
  %v217 = vld [vmem:[%s6 + $0x8] sm:$0xf]
  %v218 = vld [vmem:[%s6 + $0xc] sm:$0xf]
  %v219 = vld [vmem:[%s7] sm:$0x1]
  %v221 = vlaneseq
  %v222 = vshrl.u32 %v221, 7
  %v223 = vsub.s32 0, %v222
  %v224 = vrot.slane %v219, %v223
  %v230 = vunpack.c.l.b16 %v215
  %v231 = vunpack.c.l.b16 %v216
  %v232 = vunpack.c.l.b16 %v217
  %v233 = vunpack.c.l.b16 %v218
  %v234 = vpack.c.b16 %v231, %v230
  %v235 = vpack.c.b16 %v233, %v232
  %238 = vmatprep.subr.bf16.mxu0 0
  %239 = vmatpush1.bf16.msra.mxu0 0
  %240 = vmatprep.subr.bf16.mxu0 0
  %241 = vmatpush1.bf16.msra.mxu0 0
  %242 = vmatprep.subr.bf16.mxu0 0
  %243 = vmatpush1.bf16.msra.mxu0 0
  %244 = vmatprep.subr.bf16.mxu0 0
  %245 = vmatpush1.bf16.msra.mxu0 0
  %246 = vmatprep.subr.bf16.mxu0 0
  %247 = vmatpush1.bf16.msra.mxu0 0
  %248 = vmatprep.subr.bf16.mxu0 0
  %249 = vmatpush1.bf16.msra.mxu0 0
  %250 = vmatprep.subr.bf16.mxu0 0
  %251 = vmatpush1.bf16.msra.mxu0 %v235
  %252 = vmatprep.subr.bf16.mxu0 0
  %253 = vmatpush1.bf16.msra.mxu0 %v234
  %254 = vmatprep.subr.bf16.mxu0 0
  %255 = vmatpush2.bf16.msra.mxu0 0
  %256 = vmatprep.subr.bf16.mxu0 0
  %257 = vmatpush2.bf16.msra.mxu0 0
  %258 = vmatprep.subr.bf16.mxu0 0
  %259 = vmatpush2.bf16.msra.mxu0 0
  %260 = vmatprep.subr.bf16.mxu0 0
  %261 = vmatpush2.bf16.msra.mxu0 0
  %262 = vmatprep.subr.bf16.mxu0 0
  %263 = vmatpush2.bf16.msra.mxu0 0
  %264 = vmatprep.subr.bf16.mxu0 0
  %265 = vmatpush2.bf16.msra.mxu0 0
  %266 = vmatprep.subr.bf16.mxu0 0
  %267 = vmatpush2.bf16.msra.mxu0 0
  %268 = vmatprep.subr.bf16.mxu0 0
  %269 = vmatpush2.bf16.msra.mxu0 0
  %270 = vmatprep.mubr.bf16.mxu0 0
  %271 = vmatmul.mubr.bf16.gmra.mxu0 %v87
  %v272 = vpop.f32.mrf.mxu0
  %v273 = vadd.f32 %v224, %v272
  %v274 = vpop.f32.mrf.mxu0
  %v275 = vpop.f32.mrf.mxu0
  %v276 = vadd.f32 %v224, %v275
  %v277 = vpop.f32.mrf.mxu0
  %278 = vdwg.mxu0
  %v279 = vpack.c.bf16 %v276, %v273
  %v281 = vunpack.c.l.b16 %v279
  %v282 = vunpack.c.h.b16 %v279
  %v283 = vpack.c.b16 %v281, %v281
  %v284 = vpack.c.b16 %v282, %v282
  %287 = vst.msk [vmem:[%s10] sm:$0xf] %vm138, %v283
  %288 = vst.msk [vmem:[%s10 + $0x4] sm:$0xf] %vm138, %v284
  // Predicated region
  $region34: #{llama_kinda_forward.7} parent=0 // pred_check
    _
  $region35: #{llama_kinda_forward.7} parent=0 // pred_check_branch
    %290 = sbr.rel (0) target = $region37
  $region36: #{llama_kinda_forward.7} parent=0 // pred_region
    _
  $region37: #{llama_kinda_forward.7} parent=0 // pred_fallthru
    _
  // Predicated region
  $region38: #{llama_kinda_forward.7} parent=0 // pred_check
    _
  $region39: #{llama_kinda_forward.7} parent=0 // pred_check_branch
    %292 = sbr.rel (0) target = $region41
  $region40: #{llama_kinda_forward.7} parent=0 // pred_region
    _
  $region41: #{llama_kinda_forward.7} parent=0 // pred_fallthru
    _
  // Predicated region
  $region42: #{llama_kinda_forward.7} parent=0 // pred_check
    _
  $region43: #{llama_kinda_forward.7} parent=0 // pred_check_branch
    %294 = sbr.rel (0) target = $region45
  $region44: #{llama_kinda_forward.7} parent=0 // pred_region
    _
  $region45: #{llama_kinda_forward.7} parent=0 // pred_fallthru
    _
  // Predicated region
  $region46: #{llama_kinda_forward.7} parent=0 // pred_check
    _
  $region47: #{llama_kinda_forward.7} parent=0 // pred_check_branch
    %296 = sbr.rel (0) target = $region49
  $region48: #{llama_kinda_forward.7} parent=0 // pred_region
    _
  $region49: #{llama_kinda_forward.7} parent=0 // pred_fallthru
    _
  // Predicated region
  $region50: #{llama_kinda_forward.7} parent=0 // pred_check
    _
  $region51: #{llama_kinda_forward.7} parent=0 // pred_check_branch
    %298 = sbr.rel (0) target = $region53
  $region52: #{llama_kinda_forward.7} parent=0 // pred_region
    _
  $region53: #{llama_kinda_forward.7} parent=0 // pred_fallthru
    _
  // Predicated region
  $region54: #{llama_kinda_forward.7} parent=0 // pred_check
    _
  $region55: #{llama_kinda_forward.7} parent=0 // pred_check_branch
    %300 = sbr.rel (0) target = $region57
  $region56: #{llama_kinda_forward.7} parent=0 // pred_region
    _
  $region57: #{llama_kinda_forward.7} parent=0 // pred_fallthru
    _

// kernel: llama_kinda_forward.9
$region0: #{llama_kinda_forward.9}
  #allocation0 [shape = 'u32[]', space=smem, size = 0x4, offset = 0x4, fixed_abs, tag = 'smem constant byte address 0x4 - core index']
  #allocation1 [shape = 'u32[144,128]{1,0:T(1,128)}', space=vmem, size = 0x12000, scoped, tag = 'internal scratch']
  #allocation2 [shape = 'bf16[16,32]{1,0:T(8,128)(2,1)}', space=vmem, size = 0x1000, scoped, tag = 'scratch operand']
  %s0 = inlined_call_operand.vmem [shape: f32[16,32], index: 0, kind: input, shape index: {}]
  %s1 = inlined_call_operand.vmem [shape: f32[1,32], index: 1, kind: input, shape index: {}]
  %s2 = inlined_call_operand.vmem [shape: bf16[32,64], index: 2, kind: input, shape index: {}]
  %s3 = inlined_call_operand.vmem [shape: f32[1,64], index: 3, kind: input, shape index: {}]
  %s4 = inlined_call_operand.vmem [shape: bf16[32,64], index: 4, kind: input, shape index: {}]
  %s5 = inlined_call_operand.vmem [shape: f32[1,64], index: 5, kind: input, shape index: {}]
  %s6 = inlined_call_operand.vmem [shape: bf16[64,32], index: 6, kind: input, shape index: {}]
  %s7 = inlined_call_operand.vmem [shape: f32[1,32], index: 7, kind: input, shape index: {}]
  %s8 = inlined_call_operand.vmem [shape: f32[16,32], index: 8, kind: output, shape index: {}]
  %s9 = sld [smem:[#allocation0]]
  $region46: #{llama_kinda_forward.9} parent=0
    _
  %s11 = ssub.s32 1, %s9
  %s12 = scalar_select 0, %s11, %s9
  // Predicated region
  $region2: #{llama_kinda_forward.9} parent=0 // pred_check
    _
  $region3: #{llama_kinda_forward.9} parent=0 // pred_check_branch
    %14 = sbr.rel (0) target = $region5
  $region4: #{llama_kinda_forward.9} parent=0 // pred_region
    _
  $region5: #{llama_kinda_forward.9} parent=0 // pred_fallthru
    _
  // Predicated region
  $region6: #{llama_kinda_forward.9} parent=0 // pred_check
    _
  $region7: #{llama_kinda_forward.9} parent=0 // pred_check_branch
    %16 = sbr.rel (0) target = $region9
  $region8: #{llama_kinda_forward.9} parent=0 // pred_region
    _
  $region9: #{llama_kinda_forward.9} parent=0 // pred_fallthru
    _
  // Predicated region
  $region10: #{llama_kinda_forward.9} parent=0 // pred_check
    _
  $region11: #{llama_kinda_forward.9} parent=0 // pred_check_branch
    %18 = sbr.rel (0) target = $region13
  $region12: #{llama_kinda_forward.9} parent=0 // pred_region
    _
  $region13: #{llama_kinda_forward.9} parent=0 // pred_fallthru
    _
  // Predicated region
  $region14: #{llama_kinda_forward.9} parent=0 // pred_check
    _
  $region15: #{llama_kinda_forward.9} parent=0 // pred_check_branch
    %20 = sbr.rel (0) target = $region17
  $region16: #{llama_kinda_forward.9} parent=0 // pred_region
    _
  $region17: #{llama_kinda_forward.9} parent=0 // pred_fallthru
    _
  // Predicated region
  $region18: #{llama_kinda_forward.9} parent=0 // pred_check
    _
  $region19: #{llama_kinda_forward.9} parent=0 // pred_check_branch
    %22 = sbr.rel (0) target = $region21
  $region20: #{llama_kinda_forward.9} parent=0 // pred_region
    _
  $region21: #{llama_kinda_forward.9} parent=0 // pred_fallthru
    _
  // Predicated region
  $region22: #{llama_kinda_forward.9} parent=0 // pred_check
    _
  $region23: #{llama_kinda_forward.9} parent=0 // pred_check_branch
    %24 = sbr.rel (0) target = $region25
  $region24: #{llama_kinda_forward.9} parent=0 // pred_region
    _
  $region25: #{llama_kinda_forward.9} parent=0 // pred_fallthru
    _
  // Predicated region
  $region26: #{llama_kinda_forward.9} parent=0 // pred_check
    _
  $region27: #{llama_kinda_forward.9} parent=0 // pred_check_branch
    %26 = sbr.rel (0) target = $region29
  $region28: #{llama_kinda_forward.9} parent=0 // pred_region
    _
  $region29: #{llama_kinda_forward.9} parent=0 // pred_fallthru
    _
  // Predicated region
  $region30: #{llama_kinda_forward.9} parent=0 // pred_check
    _
  $region31: #{llama_kinda_forward.9} parent=0 // pred_check_branch
    %28 = sbr.rel (0) target = $region33
  $region32: #{llama_kinda_forward.9} parent=0 // pred_region
    _
  $region33: #{llama_kinda_forward.9} parent=0 // pred_fallthru
    _
  %p30 = scmp.eq.s32.totalorder 0, 0
  // Predicated region
  $region34: #{llama_kinda_forward.9} parent=0 // pred_check
    %p31 = pneg %p30
  $region35: #{llama_kinda_forward.9} parent=0 // pred_check_branch
    %33 = sbr.rel (%p31) target = $region37
  $region36: #{llama_kinda_forward.9} parent=0 // pred_region
    %v34 = vld [vmem:[%s0] sm:$0xff]
    %v35 = vld [vmem:[%s0 + $0x8] sm:$0xff]
    %v36 = vld [vmem:[%s1] sm:$0x1]
    %v37 = vmul.f32 %v34, %v34
    %v38 = vmul.f32 %v35, %v35
    %vm39 = vcmask 261120
    %v40 = vsel %vm39, %v37, 0.0
    %41 = vadd.xlane.f32.xlu0 %v40
    %v42 = vpop.xlane.xlu0 %41
    %v43 = vsel %vm39, %v38, 0.0
    %44 = vadd.xlane.f32.xlu0 %v43
    %v45 = vpop.xlane.xlu0 %44
    %v46 = vrcp.pop 32.0
    %v47 = vmul.f32 %v42, %v46
    %v48 = vmul.f32 %v45, %v46
    %v49 = vadd.f32 %v47, 1e-06
    %v50 = vadd.f32 %v48, 1e-06
    %v51 = vrsqrt.pop %v49
    %v52 = vrsqrt.pop %v50
    %v53 = vmul.f32 %v34, %v51
    %v54 = vmul.f32 %v35, %v52
    %v56 = vlaneseq
    %v57 = vshrl.u32 %v56, 7
    %v58 = vsub.s32 0, %v57
    %v59 = vrot.slane %v36, %v58
    %v61 = vmul.f32 %v53, %v59
    %v62 = vmul.f32 %v54, %v59
    %v63 = vpack.c.bf16 %v62, %v61
    %v65 = vunpack.c.l.b16 %v63
    %v66 = vunpack.c.h.b16 %v63
    %v67 = vpack.c.b16 %v65, %v65
    %v68 = vpack.c.b16 %v66, %v66
    %vm71 = vcmask 257024
    %72 = vst.msk [vmem:[#allocation2] sm:$0xf] %vm71, %v67
    %73 = vst.msk [vmem:[#allocation2 + $0x4] sm:$0xf] %vm71, %v68
    %v74 = vld [vmem:[%s7] sm:$0x1]
    %v76 = vlaneseq
    %v77 = vshrl.u32 %v76, 7
    %v78 = vsub.s32 0, %v77
    %v79 = vrot.slane %v74, %v78
    %v81 = vadd.f32 %v34, %v79
    %v82 = vadd.f32 %v35, %v79
    %83 = vst.msk [vmem:[%s8] sm:$0xff] %vm39, %v81
    %84 = vst.msk [vmem:[%s8 + $0x8] sm:$0xff] %vm39, %v82
  $region37: #{llama_kinda_forward.9} parent=0 // pred_fallthru
    _
  %v85 = vld [vmem:[#allocation2] sm:$0xf]
  %v86 = vld [vmem:[#allocation2 + $0x4] sm:$0xf]
  %v87 = vld [vmem:[%s2] sm:$0xf]
  %v88 = vld [vmem:[%s2 + $0x4] sm:$0xf]
  %v89 = vld [vmem:[%s2 + $0x8] sm:$0xf]
  %v90 = vld [vmem:[%s2 + $0xc] sm:$0xf]
  %v91 = vld [vmem:[%s3] sm:$0x1]
  %v93 = vlaneseq
  %v94 = vshrl.u32 %v93, 7
  %v95 = vsub.s32 0, %v94
  %v96 = vrot.slane %v91, %v95
  %v100 = vunpack.c.l.b16 %v85
  %v101 = vunpack.c.l.b16 %v86
  %v102 = vpack.c.b16 %v101, %v100
  %v107 = vunpack.c.l.b16 %v87
  %v108 = vunpack.c.l.b16 %v88
  %v109 = vunpack.c.l.b16 %v89
  %v110 = vunpack.c.l.b16 %v90
  %v111 = vpack.c.b16 %v108, %v107
  %v112 = vpack.c.b16 %v110, %v109
  %vm115 = vcmask 261120
  %v117 = vsel %vm115, %v102, 0
  %119 = vmatprep.subr.bf16.mxu0 0
  %120 = vmatpush1.bf16.msra.mxu0 0
  %121 = vmatprep.subr.bf16.mxu0 0
  %122 = vmatpush1.bf16.msra.mxu0 0
  %123 = vmatprep.subr.bf16.mxu0 0
  %124 = vmatpush1.bf16.msra.mxu0 0
  %125 = vmatprep.subr.bf16.mxu0 0
  %126 = vmatpush1.bf16.msra.mxu0 0
  %127 = vmatprep.subr.bf16.mxu0 0
  %128 = vmatpush1.bf16.msra.mxu0 0
  %129 = vmatprep.subr.bf16.mxu0 0
  %130 = vmatpush1.bf16.msra.mxu0 0
  %131 = vmatprep.subr.bf16.mxu0 0
  %132 = vmatpush1.bf16.msra.mxu0 %v112
  %133 = vmatprep.subr.bf16.mxu0 0
  %134 = vmatpush1.bf16.msra.mxu0 %v111
  %135 = vmatprep.subr.bf16.mxu0 0
  %136 = vmatpush2.bf16.msra.mxu0 0
  %137 = vmatprep.subr.bf16.mxu0 0
  %138 = vmatpush2.bf16.msra.mxu0 0
  %139 = vmatprep.subr.bf16.mxu0 0
  %140 = vmatpush2.bf16.msra.mxu0 0
  %141 = vmatprep.subr.bf16.mxu0 0
  %142 = vmatpush2.bf16.msra.mxu0 0
  %143 = vmatprep.subr.bf16.mxu0 0
  %144 = vmatpush2.bf16.msra.mxu0 0
  %145 = vmatprep.subr.bf16.mxu0 0
  %146 = vmatpush2.bf16.msra.mxu0 0
  %147 = vmatprep.subr.bf16.mxu0 0
  %148 = vmatpush2.bf16.msra.mxu0 0
  %149 = vmatprep.subr.bf16.mxu0 0
  %150 = vmatpush2.bf16.msra.mxu0 0
  %151 = vmatprep.mubr.bf16.mxu0 0
  %152 = vmatmul.mubr.bf16.gmra.mxu0 %v117
  %v153 = vpop.f32.mrf.mxu0
  %v154 = vadd.f32 %v96, %v153
  %v155 = vpop.f32.mrf.mxu0
  %v156 = vpop.f32.mrf.mxu0
  %v157 = vadd.f32 %v96, %v156
  %v158 = vpop.f32.mrf.mxu0
  %159 = vdwg.mxu0
  %v160 = vld [vmem:[%s4] sm:$0xf]
  %v161 = vld [vmem:[%s4 + $0x4] sm:$0xf]
  %v162 = vld [vmem:[%s4 + $0x8] sm:$0xf]
  %v163 = vld [vmem:[%s4 + $0xc] sm:$0xf]
  %v164 = vld [vmem:[%s5] sm:$0x1]
  %v166 = vlaneseq
  %v167 = vshrl.u32 %v166, 7
  %v168 = vsub.s32 0, %v167
  %v169 = vrot.slane %v164, %v168
  %v175 = vunpack.c.l.b16 %v160
  %v176 = vunpack.c.l.b16 %v161
  %v177 = vunpack.c.l.b16 %v162
  %v178 = vunpack.c.l.b16 %v163
  %v179 = vpack.c.b16 %v176, %v175
  %v180 = vpack.c.b16 %v178, %v177
  %183 = vmatprep.subr.bf16.mxu0 0
  %184 = vmatpush1.bf16.msra.mxu0 0
  %185 = vmatprep.subr.bf16.mxu0 0
  %186 = vmatpush1.bf16.msra.mxu0 0
  %187 = vmatprep.subr.bf16.mxu0 0
  %188 = vmatpush1.bf16.msra.mxu0 0
  %189 = vmatprep.subr.bf16.mxu0 0
  %190 = vmatpush1.bf16.msra.mxu0 0
  %191 = vmatprep.subr.bf16.mxu0 0
  %192 = vmatpush1.bf16.msra.mxu0 0
  %193 = vmatprep.subr.bf16.mxu0 0
  %194 = vmatpush1.bf16.msra.mxu0 0
  %195 = vmatprep.subr.bf16.mxu0 0
  %196 = vmatpush1.bf16.msra.mxu0 %v180
  %197 = vmatprep.subr.bf16.mxu0 0
  %198 = vmatpush1.bf16.msra.mxu0 %v179
  %199 = vmatprep.subr.bf16.mxu0 0
  %200 = vmatpush2.bf16.msra.mxu0 0
  %201 = vmatprep.subr.bf16.mxu0 0
  %202 = vmatpush2.bf16.msra.mxu0 0
  %203 = vmatprep.subr.bf16.mxu0 0
  %204 = vmatpush2.bf16.msra.mxu0 0
  %205 = vmatprep.subr.bf16.mxu0 0
  %206 = vmatpush2.bf16.msra.mxu0 0
  %207 = vmatprep.subr.bf16.mxu0 0
  %208 = vmatpush2.bf16.msra.mxu0 0
  %209 = vmatprep.subr.bf16.mxu0 0
  %210 = vmatpush2.bf16.msra.mxu0 0
  %211 = vmatprep.subr.bf16.mxu0 0
  %212 = vmatpush2.bf16.msra.mxu0 0
  %213 = vmatprep.subr.bf16.mxu0 0
  %214 = vmatpush2.bf16.msra.mxu0 0
  %215 = vmatprep.mubr.bf16.mxu0 0
  %216 = vmatmul.mubr.bf16.gmra.mxu0 %v117
  %v217 = vpop.f32.mrf.mxu0
  %v218 = vadd.f32 %v169, %v217
  %v219 = vpop.f32.mrf.mxu0
  %v220 = vpop.f32.mrf.mxu0
  %v221 = vadd.f32 %v169, %v220
  %v222 = vpop.f32.mrf.mxu0
  %223 = vdwg.mxu0
  %v224 = vxor.u32 %v154, 2147483648
  %v225 = vxor.u32 %v157, 2147483648
  %v226 = vmul.f32 %v224, 1.442695
  %v227 = vpow.pop %v226
  %v228 = vmul.f32 %v225, 1.442695
  %v229 = vpow.pop %v228
  %v230 = vadd.f32 %v227, 1.0
  %v231 = vadd.f32 %v229, 1.0
  %v232 = vrcp.pop %v230
  %v233 = vmul.f32 1.0, %v232
  %v234 = vrcp.pop %v231
  %v235 = vmul.f32 1.0, %v234
  %v236 = vmul.f32 %v154, %v233
  %v237 = vmul.f32 %v157, %v235
  %v238 = vmul.f32 %v236, %v218
  %v239 = vmul.f32 %v237, %v221
  %v240 = vpack.c.bf16 %v239, %v238
  %v241 = vld [vmem:[%s8] sm:$0xff]
  %v242 = vld [vmem:[%s8 + $0x8] sm:$0xff]
  %v243 = vld [vmem:[%s6] sm:$0xf]
  %v244 = vld [vmem:[%s6 + $0x4] sm:$0xf]
  %v245 = vld [vmem:[%s6 + $0x8] sm:$0xf]
  %v246 = vld [vmem:[%s6 + $0xc] sm:$0xf]
  %v247 = vld [vmem:[%s6 + $0x10] sm:$0xf]
  %v248 = vld [vmem:[%s6 + $0x14] sm:$0xf]
  %v249 = vld [vmem:[%s6 + $0x18] sm:$0xf]
  %v250 = vld [vmem:[%s6 + $0x1c] sm:$0xf]
  %v259 = vunpack.c.l.b16 %v243
  %v260 = vunpack.c.l.b16 %v244
  %v261 = vunpack.c.l.b16 %v245
  %v262 = vunpack.c.l.b16 %v246
  %v263 = vunpack.c.l.b16 %v247
  %v264 = vunpack.c.l.b16 %v248
  %v265 = vunpack.c.l.b16 %v249
  %v266 = vunpack.c.l.b16 %v250
  %v267 = vpack.c.b16 %v260, %v259
  %v268 = vpack.c.b16 %v262, %v261
  %v269 = vpack.c.b16 %v264, %v263
  %v270 = vpack.c.b16 %v266, %v265
  %vm275 = vcmask 523264
  %v277 = vsel %vm275, %v240, 0
  %279 = vmatprep.subr.bf16.mxu0 0
  %280 = vmatpush1.bf16.msra.mxu0 0
  %281 = vmatprep.subr.bf16.mxu0 0
  %282 = vmatpush1.bf16.msra.mxu0 0
  %283 = vmatprep.subr.bf16.mxu0 0
  %284 = vmatpush1.bf16.msra.mxu0 0
  %285 = vmatprep.subr.bf16.mxu0 0
  %286 = vmatpush1.bf16.msra.mxu0 0
  %287 = vmatprep.subr.bf16.mxu0 0
  %288 = vmatpush1.bf16.msra.mxu0 %v270
  %289 = vmatprep.subr.bf16.mxu0 0
  %290 = vmatpush1.bf16.msra.mxu0 %v269
  %291 = vmatprep.subr.bf16.mxu0 0
  %292 = vmatpush1.bf16.msra.mxu0 %v268
  %293 = vmatprep.subr.bf16.mxu0 0
  %294 = vmatpush1.bf16.msra.mxu0 %v267
  %295 = vmatprep.subr.bf16.mxu0 0
  %296 = vmatpush2.bf16.msra.mxu0 0
  %297 = vmatprep.subr.bf16.mxu0 0
  %298 = vmatpush2.bf16.msra.mxu0 0
  %299 = vmatprep.subr.bf16.mxu0 0
  %300 = vmatpush2.bf16.msra.mxu0 0
  %301 = vmatprep.subr.bf16.mxu0 0
  %302 = vmatpush2.bf16.msra.mxu0 0
  %303 = vmatprep.subr.bf16.mxu0 0
  %304 = vmatpush2.bf16.msra.mxu0 0
  %305 = vmatprep.subr.bf16.mxu0 0
  %306 = vmatpush2.bf16.msra.mxu0 0
  %307 = vmatprep.subr.bf16.mxu0 0
  %308 = vmatpush2.bf16.msra.mxu0 0
  %309 = vmatprep.subr.bf16.mxu0 0
  %310 = vmatpush2.bf16.msra.mxu0 0
  %311 = vmatprep.mubr.bf16.mxu0 0
  %312 = vmatmul.mubr.bf16.gmra.mxu0 %v277
  %v313 = vpop.f32.mrf.mxu0
  %v314 = vadd.f32 0.0, %v313
  %v315 = vpop.f32.mrf.mxu0
  %v316 = vpop.f32.mrf.mxu0
  %v317 = vadd.f32 0.0, %v316
  %v318 = vpop.f32.mrf.mxu0
  %319 = vdwg.mxu0
  %v320 = vadd.f32 %v241, %v314
  %v321 = vadd.f32 %v242, %v317
  %322 = vst.msk [vmem:[%s8] sm:$0xff] %vm115, %v320
  %323 = vst.msk [vmem:[%s8 + $0x8] sm:$0xff] %vm115, %v321
  // Predicated region
  $region38: #{llama_kinda_forward.9} parent=0 // pred_check
    _
  $region39: #{llama_kinda_forward.9} parent=0 // pred_check_branch
    %325 = sbr.rel (0) target = $region41
  $region40: #{llama_kinda_forward.9} parent=0 // pred_region
    _
  $region41: #{llama_kinda_forward.9} parent=0 // pred_fallthru
    _
  // Predicated region
  $region42: #{llama_kinda_forward.9} parent=0 // pred_check
    _
  $region43: #{llama_kinda_forward.9} parent=0 // pred_check_branch
    %327 = sbr.rel (0) target = $region45
  $region44: #{llama_kinda_forward.9} parent=0 // pred_region
    _
  $region45: #{llama_kinda_forward.9} parent=0 // pred_fallthru
    _

// kernel: llama_kinda_forward.8
$region0: #{llama_kinda_forward.8}
  #allocation0 [shape = 'u32[]', space=smem, size = 0x4, offset = 0x4, fixed_abs, tag = 'smem constant byte address 0x4 - core index']
  #allocation1 [shape = 'u32[144,128]{1,0:T(1,128)}', space=vmem, size = 0x12000, scoped, tag = 'internal scratch']
  %s0 = inlined_call_operand.vmem [shape: bf16[2,8,32], index: 0, kind: input, shape index: {}]
  %s1 = inlined_call_operand.vmem [shape: bf16[2,8,32], index: 1, kind: input, shape index: {}]
  %s2 = inlined_call_operand.vmem [shape: bf16[2,8,32], index: 2, kind: input, shape index: {}]
  %s3 = inlined_call_operand.vmem [shape: f32[8,8], index: 3, kind: input, shape index: {}]
  %s4 = inlined_call_operand.vmem [shape: f32[8,8], index: 4, kind: input, shape index: {}]
  %s5 = inlined_call_operand.vmem [shape: f32[2,8,32], index: 5, kind: input, shape index: {}]
  %s6 = inlined_call_operand.vmem [shape: bf16[32,32], index: 6, kind: input, shape index: {}]
  %s7 = inlined_call_operand.vmem [shape: f32[1,32], index: 7, kind: input, shape index: {}]
  %s8 = inlined_call_operand.vmem [shape: f32[2,8,32], index: 8, kind: output, shape index: {}]
  %s9 = sld [smem:[#allocation0]]
  $region65: #{llama_kinda_forward.8} parent=0
    _
  %s11 = ssub.s32 1, %s9
  %s12 = scalar_select 0, %s11, %s9
  loop: start=0, step=1, limit=4
  $region2: #{llama_kinda_forward.8} parent=0 // loop_pre_header
    _
  $region3: #{llama_kinda_forward.8} parent=0 // loop_header
    %s14 = sphi 0, %s18
    %p15 = scmp.ge.s32.totalorder %s14, 4
    %s24 = sphi 0, %s26
    %s27 = sphi 0, %s24
    %s28 = sphi 0, %s27
    %s44 = sphi 0, %s28
    %s50 = sphi 0, %s52
    %s53 = sphi 0, %s50
    %s54 = sphi 0, %s53
    %s70 = sphi 0, %s54
    %s76 = sphi 0, %s78
    %s79 = sphi 0, %s76
    %s80 = sphi 0, %s79
    %s96 = sphi 0, %s80
    %s100 = sphi 0, %s100
    %s102 = sphi 0, %s100
    %s103 = sphi 0, %s102
    %s117 = sphi 0, %s103
    %s121 = sphi 0, %s121
    %s123 = sphi 0, %s121
    %s124 = sphi 0, %s123
    %s138 = sphi 0, %s124
    %s144 = sphi 0, %s146
    %s147 = sphi 0, %s144
    %s148 = sphi 0, %s147
    %s164 = sphi 0, %s148
    %s168 = sphi 0, %s168
    %s170 = sphi 0, %s168
    %s171 = sphi 0, %s170
    %s185 = sphi 0, %s171
    %s189 = sphi 0, %s189
    %s191 = sphi 0, %s189
    %s192 = sphi 0, %s191
    %s206 = sphi 0, %s192
    %s212 = sphi 0, %s214
    %s215 = sphi 0, %s212
    %s216 = sphi 0, %s215
    %s232 = sphi 0, %s216
  $region4: #{llama_kinda_forward.8} parent=0 // loop_header_branch
    %17 = sbr.rel (%p15) target = $region8
  $region5: #{llama_kinda_forward.8} parent=0 // loop_body
    %s19 = ssub.s32 %s14, 1
    %s20 = ssub.s32 %s14, 2
    %s21 = sadd.s32 %s14, 1
    %s22 = ssub.s32 %s14, %s21
    %p23 = scmp.eq.s32.totalorder %s22, 0
    %s25 = sadd.s32 %s24, 1
    %s26 = scalar_select %p23, %s24, %s25
    %p29 = pneg %p23
    %p30 = scmp.eq.s32.totalorder %s14, 1
    %p31 = por %p29, %p30
    %p32 = scmp.ne.s32.totalorder %s24, %s27
    %p33 = scmp.eq.s32.totalorder %s14, 0
    %p34 = por %p32, %p33
    %p35 = scmp.ne.s32.totalorder %s24, %s27
    %p36 = scmp.eq.s32.totalorder %s19, 1
    %p37 = por %p35, %p36
    %p38 = scmp.ne.s32.totalorder %s27, %s28
    %p39 = scmp.eq.s32.totalorder %s19, 0
    %p40 = por %p38, %p39
    %p41 = scmp.ne.s32.totalorder %s27, %s28
    %p42 = scmp.eq.s32.totalorder %s20, 1
    %p43 = por %p41, %p42
    %p45 = scmp.ne.s32.totalorder %s28, %s44
    %p46 = scmp.eq.s32.totalorder %s20, 0
    %p47 = por %p45, %p46
    %s48 = ssub.s32 %s14, %s21
    %p49 = scmp.eq.s32.totalorder %s48, 0
    %s51 = sadd.s32 %s50, 1
    %s52 = scalar_select %p49, %s50, %s51
    %p55 = pneg %p49
    %p56 = scmp.eq.s32.totalorder %s14, 1
    %p57 = por %p55, %p56
    %p58 = scmp.ne.s32.totalorder %s50, %s53
    %p59 = scmp.eq.s32.totalorder %s14, 0
    %p60 = por %p58, %p59
    %p61 = scmp.ne.s32.totalorder %s50, %s53
    %p62 = scmp.eq.s32.totalorder %s19, 1
    %p63 = por %p61, %p62
    %p64 = scmp.ne.s32.totalorder %s53, %s54
    %p65 = scmp.eq.s32.totalorder %s19, 0
    %p66 = por %p64, %p65
    %p67 = scmp.ne.s32.totalorder %s53, %s54
    %p68 = scmp.eq.s32.totalorder %s20, 1
    %p69 = por %p67, %p68
    %p71 = scmp.ne.s32.totalorder %s54, %s70
    %p72 = scmp.eq.s32.totalorder %s20, 0
    %p73 = por %p71, %p72
    %s74 = ssub.s32 %s14, %s21
    %p75 = scmp.eq.s32.totalorder %s74, 0
    %s77 = sadd.s32 %s76, 1
    %s78 = scalar_select %p75, %s76, %s77
    %p81 = pneg %p75
    %p82 = scmp.eq.s32.totalorder %s14, 1
    %p83 = por %p81, %p82
    %p84 = scmp.ne.s32.totalorder %s76, %s79
    %p85 = scmp.eq.s32.totalorder %s14, 0
    %p86 = por %p84, %p85
    %p87 = scmp.ne.s32.totalorder %s76, %s79
    %p88 = scmp.eq.s32.totalorder %s19, 1
    %p89 = por %p87, %p88
    %p90 = scmp.ne.s32.totalorder %s79, %s80
    %p91 = scmp.eq.s32.totalorder %s19, 0
    %p92 = por %p90, %p91
    %p93 = scmp.ne.s32.totalorder %s79, %s80
    %p94 = scmp.eq.s32.totalorder %s20, 1
    %p95 = por %p93, %p94
    %p97 = scmp.ne.s32.totalorder %s80, %s96
    %p98 = scmp.eq.s32.totalorder %s20, 0
    %p99 = por %p97, %p98
    %s101 = sadd.s32 %s100, 1
    %p104 = scmp.eq.s32.totalorder %s14, 1
    %p105 = scmp.ne.s32.totalorder %s100, %s102
    %p106 = scmp.eq.s32.totalorder %s14, 0
    %p107 = por %p105, %p106
    %p108 = scmp.ne.s32.totalorder %s100, %s102
    %p109 = scmp.eq.s32.totalorder %s19, 1
    %p110 = por %p108, %p109
    %p111 = scmp.ne.s32.totalorder %s102, %s103
    %p112 = scmp.eq.s32.totalorder %s19, 0
    %p113 = por %p111, %p112
    %p114 = scmp.ne.s32.totalorder %s102, %s103
    %p115 = scmp.eq.s32.totalorder %s20, 1
    %p116 = por %p114, %p115
    %p118 = scmp.ne.s32.totalorder %s103, %s117
    %p119 = scmp.eq.s32.totalorder %s20, 0
    %p120 = por %p118, %p119
    %s122 = sadd.s32 %s121, 1
    %p125 = scmp.eq.s32.totalorder %s14, 1
    %p126 = scmp.ne.s32.totalorder %s121, %s123
    %p127 = scmp.eq.s32.totalorder %s14, 0
    %p128 = por %p126, %p127
    %p129 = scmp.ne.s32.totalorder %s121, %s123
    %p130 = scmp.eq.s32.totalorder %s19, 1
    %p131 = por %p129, %p130
    %p132 = scmp.ne.s32.totalorder %s123, %s124
    %p133 = scmp.eq.s32.totalorder %s19, 0
    %p134 = por %p132, %p133
    %p135 = scmp.ne.s32.totalorder %s123, %s124
    %p136 = scmp.eq.s32.totalorder %s20, 1
    %p137 = por %p135, %p136
    %p139 = scmp.ne.s32.totalorder %s124, %s138
    %p140 = scmp.eq.s32.totalorder %s20, 0
    %p141 = por %p139, %p140
    %s142 = ssub.s32 %s14, %s21
    %p143 = scmp.eq.s32.totalorder %s142, 0
    %s145 = sadd.s32 %s144, 1
    %s146 = scalar_select %p143, %s144, %s145
    %p149 = pneg %p143
    %p150 = scmp.eq.s32.totalorder %s14, 1
    %p151 = por %p149, %p150
    %p152 = scmp.ne.s32.totalorder %s144, %s147
    %p153 = scmp.eq.s32.totalorder %s14, 0
    %p154 = por %p152, %p153
    %p155 = scmp.ne.s32.totalorder %s144, %s147
    %p156 = scmp.eq.s32.totalorder %s19, 1
    %p157 = por %p155, %p156
    %p158 = scmp.ne.s32.totalorder %s147, %s148
    %p159 = scmp.eq.s32.totalorder %s19, 0
    %p160 = por %p158, %p159
    %p161 = scmp.ne.s32.totalorder %s147, %s148
    %p162 = scmp.eq.s32.totalorder %s20, 1
    %p163 = por %p161, %p162
    %p165 = scmp.ne.s32.totalorder %s148, %s164
    %p166 = scmp.eq.s32.totalorder %s20, 0
    %p167 = por %p165, %p166
    %s169 = sadd.s32 %s168, 1
    %p172 = scmp.eq.s32.totalorder %s14, 1
    %p173 = scmp.ne.s32.totalorder %s168, %s170
    %p174 = scmp.eq.s32.totalorder %s14, 0
    %p175 = por %p173, %p174
    %p176 = scmp.ne.s32.totalorder %s168, %s170
    %p177 = scmp.eq.s32.totalorder %s19, 1
    %p178 = por %p176, %p177
    %p179 = scmp.ne.s32.totalorder %s170, %s171
    %p180 = scmp.eq.s32.totalorder %s19, 0
    %p181 = por %p179, %p180
    %p182 = scmp.ne.s32.totalorder %s170, %s171
    %p183 = scmp.eq.s32.totalorder %s20, 1
    %p184 = por %p182, %p183
    %p186 = scmp.ne.s32.totalorder %s171, %s185
    %p187 = scmp.eq.s32.totalorder %s20, 0
    %p188 = por %p186, %p187
    %s190 = sadd.s32 %s189, 1
    %p193 = scmp.eq.s32.totalorder %s14, 1
    %p194 = scmp.ne.s32.totalorder %s189, %s191
    %p195 = scmp.eq.s32.totalorder %s14, 0
    %p196 = por %p194, %p195
    %p197 = scmp.ne.s32.totalorder %s189, %s191
    %p198 = scmp.eq.s32.totalorder %s19, 1
    %p199 = por %p197, %p198
    %p200 = scmp.ne.s32.totalorder %s191, %s192
    %p201 = scmp.eq.s32.totalorder %s19, 0
    %p202 = por %p200, %p201
    %p203 = scmp.ne.s32.totalorder %s191, %s192
    %p204 = scmp.eq.s32.totalorder %s20, 1
    %p205 = por %p203, %p204
    %p207 = scmp.ne.s32.totalorder %s192, %s206
    %p208 = scmp.eq.s32.totalorder %s20, 0
    %p209 = por %p207, %p208
    %s210 = ssub.s32 %s14, %s21
    %p211 = scmp.eq.s32.totalorder %s210, 0
    %s213 = sadd.s32 %s212, 1
    %s214 = scalar_select %p211, %s212, %s213
    %p217 = pneg %p211
    %p218 = scmp.eq.s32.totalorder %s14, 1
    %p219 = por %p217, %p218
    %p220 = scmp.ne.s32.totalorder %s212, %s215
    %p221 = scmp.eq.s32.totalorder %s14, 0
    %p222 = por %p220, %p221
    %p223 = scmp.ne.s32.totalorder %s212, %s215
    %p224 = scmp.eq.s32.totalorder %s19, 1
    %p225 = por %p223, %p224
    %p226 = scmp.ne.s32.totalorder %s215, %s216
    %p227 = scmp.eq.s32.totalorder %s19, 0
    %p228 = por %p226, %p227
    %p229 = scmp.ne.s32.totalorder %s215, %s216
    %p230 = scmp.eq.s32.totalorder %s20, 1
    %p231 = por %p229, %p230
    %p233 = scmp.ne.s32.totalorder %s216, %s232
    %p234 = scmp.eq.s32.totalorder %s20, 0
    %p235 = por %p233, %p234
    %p236 = scmp.le.s32.totalorder 1, %s14
    %p237 = scmp.lt.s32.totalorder %s14, 3
    %p238 = pnand %p236, %p237
    %p239 = pneg %p238
    // Predicated region
    $region9: #{llama_kinda_forward.8} parent=5 // pred_check
      _
    $region10: #{llama_kinda_forward.8} parent=5 // pred_check_branch
      %241 = sbr.rel (%p238) target = $region12
    $region11: #{llama_kinda_forward.8} parent=5 // pred_region
      %s242 = ssub.s32 %s14, 1
      // Predicated region
      $region13: #{llama_kinda_forward.8} parent=11 // pred_check
        %p243 = pneg %p113
      $region14: #{llama_kinda_forward.8} parent=11 // pred_check_branch
        %245 = sbr.rel (%p243) target = $region16
      $region15: #{llama_kinda_forward.8} parent=11 // pred_region
        _
      $region16: #{llama_kinda_forward.8} parent=11 // pred_fallthru
        _
      // Predicated region
      $region17: #{llama_kinda_forward.8} parent=11 // pred_check
        %p246 = pneg %p134
      $region18: #{llama_kinda_forward.8} parent=11 // pred_check_branch
        %248 = sbr.rel (%p246) target = $region20
      $region19: #{llama_kinda_forward.8} parent=11 // pred_region
        _
      $region20: #{llama_kinda_forward.8} parent=11 // pred_fallthru
        _
      // Predicated region
      $region21: #{llama_kinda_forward.8} parent=11 // pred_check
        %p249 = pneg %p181
      $region22: #{llama_kinda_forward.8} parent=11 // pred_check_branch
        %251 = sbr.rel (%p249) target = $region24
      $region23: #{llama_kinda_forward.8} parent=11 // pred_region
        _
      $region24: #{llama_kinda_forward.8} parent=11 // pred_fallthru
        _
      // Predicated region
      $region25: #{llama_kinda_forward.8} parent=11 // pred_check
        %p252 = pneg %p202
      $region26: #{llama_kinda_forward.8} parent=11 // pred_check_branch
        %254 = sbr.rel (%p252) target = $region28
      $region27: #{llama_kinda_forward.8} parent=11 // pred_region
        _
      $region28: #{llama_kinda_forward.8} parent=11 // pred_fallthru
        _
    $region12: #{llama_kinda_forward.8} parent=5 // pred_fallthru
      _
    %p255 = scmp.lt.s32.totalorder %s14, 2
    // Predicated region
    $region29: #{llama_kinda_forward.8} parent=5 // pred_check
      %p256 = pneg %p255
    $region30: #{llama_kinda_forward.8} parent=5 // pred_check_branch
      %258 = sbr.rel (%p256) target = $region32
    $region31: #{llama_kinda_forward.8} parent=5 // pred_region
      // Predicated region
      $region33: #{llama_kinda_forward.8} parent=31 // pred_check
        %p259 = pneg %p34
      $region34: #{llama_kinda_forward.8} parent=31 // pred_check_branch
        %261 = sbr.rel (%p259) target = $region36
      $region35: #{llama_kinda_forward.8} parent=31 // pred_region
        %p262 = scmp.lt.s32.totalorder %s14, 1
        %s263 = scalar_select %p262, %s14, 1
        %s264 = smul.addr %s263, 4
        %s265 = scalar_lea.vmem %s0, %s264
      $region36: #{llama_kinda_forward.8} parent=31 // pred_fallthru
        _
      // Predicated region
      $region37: #{llama_kinda_forward.8} parent=31 // pred_check
        %p266 = pneg %p60
      $region38: #{llama_kinda_forward.8} parent=31 // pred_check_branch
        %268 = sbr.rel (%p266) target = $region40
      $region39: #{llama_kinda_forward.8} parent=31 // pred_region
        %p269 = scmp.lt.s32.totalorder %s14, 1
        %s270 = scalar_select %p269, %s14, 1
        %s271 = smul.addr %s270, 4
        %s272 = scalar_lea.vmem %s1, %s271
      $region40: #{llama_kinda_forward.8} parent=31 // pred_fallthru
        _
      // Predicated region
      $region41: #{llama_kinda_forward.8} parent=31 // pred_check
        %p273 = pneg %p86
      $region42: #{llama_kinda_forward.8} parent=31 // pred_check_branch
        %275 = sbr.rel (%p273) target = $region44
      $region43: #{llama_kinda_forward.8} parent=31 // pred_region
        %p276 = scmp.lt.s32.totalorder %s14, 1
        %s277 = scalar_select %p276, %s14, 1
        %s278 = smul.addr %s277, 4
        %s279 = scalar_lea.vmem %s2, %s278
      $region44: #{llama_kinda_forward.8} parent=31 // pred_fallthru
        _
      // Predicated region
      $region45: #{llama_kinda_forward.8} parent=31 // pred_check
        %p280 = pneg %p154
      $region46: #{llama_kinda_forward.8} parent=31 // pred_check_branch
        %282 = sbr.rel (%p280) target = $region48
      $region47: #{llama_kinda_forward.8} parent=31 // pred_region
        %p283 = scmp.lt.s32.totalorder %s14, 1
        %s284 = scalar_select %p283, %s14, 1
        %s285 = smul.addr %s284, 8
        %s286 = scalar_lea.vmem %s5, %s285
      $region48: #{llama_kinda_forward.8} parent=31 // pred_fallthru
        _
    $region32: #{llama_kinda_forward.8} parent=5 // pred_fallthru
      _
    %p287 = scmp.le.s32.totalorder 1, %s14
    %p288 = scmp.lt.s32.totalorder %s14, 3
    %p289 = pnand %p287, %p288
    %p290 = pneg %p289
    // Predicated region
    $region49: #{llama_kinda_forward.8} parent=5 // pred_check
      _
    $region50: #{llama_kinda_forward.8} parent=5 // pred_check_branch
      %292 = sbr.rel (%p289) target = $region52
    $region51: #{llama_kinda_forward.8} parent=5 // pred_region
      %s293 = ssub.s32 %s14, 1
      %p294 = scmp.lt.s32.totalorder %s19, 1
      %s295 = scalar_select %p294, %s19, 1
      %s296 = smul.addr %s295, 4
      %s297 = scalar_lea.vmem %s0, %s296
      %p298 = pneg %p40
      %p299 = pneg %p37
      %p300 = scmp.lt.s32.totalorder %s19, 1
      %s301 = scalar_select %p300, %s19, 1
      %s302 = smul.addr %s301, 4
      %s303 = scalar_lea.vmem %s1, %s302
      %p304 = pneg %p66
      %p305 = pneg %p63
      %p306 = scmp.lt.s32.totalorder %s19, 1
      %s307 = scalar_select %p306, %s19, 1
      %s308 = smul.addr %s307, 4
      %s309 = scalar_lea.vmem %s2, %s308
      %p310 = pneg %p92
      %p311 = pneg %p89
      %p312 = pneg %p113
      %p313 = pneg %p110
      %p314 = pneg %p134
      %p315 = pneg %p131
      %p316 = scmp.lt.s32.totalorder %s19, 1
      %s317 = scalar_select %p316, %s19, 1
      %s318 = smul.addr %s317, 8
      %s319 = scalar_lea.vmem %s5, %s318
      %p320 = pneg %p160
      %p321 = pneg %p157
      %p322 = pneg %p181
      %p323 = pneg %p178
      %p324 = pneg %p202
      %p325 = pneg %p199
      %p326 = pneg %p228
      %p327 = pneg %p225
      %p328 = scmp.lt.s32.totalorder %s19, 1
      %s329 = scalar_select %p328, %s19, 1
      %s330 = smul.addr %s329, 8
      %s331 = scalar_lea.vmem %s8, %s330
      %p332 = scmp.lt.s32.totalorder %s19, 1
      %s333 = scalar_select %p332, %s19, 1
      %s334 = smul.addr %s333, 4
      %s335 = scalar_lea.vmem %s0, %s334
      %p336 = scmp.lt.s32.totalorder %s19, 1
      %s337 = scalar_select %p336, %s19, 1
      %s338 = smul.addr %s337, 4
      %s339 = scalar_lea.vmem %s1, %s338
      %p340 = scmp.lt.s32.totalorder %s19, 1
      %s341 = scalar_select %p340, %s19, 1
      %s342 = smul.addr %s341, 4
      %s343 = scalar_lea.vmem %s2, %s342
      %p344 = scmp.lt.s32.totalorder %s19, 1
      %s345 = scalar_select %p344, %s19, 1
      %s346 = smul.addr %s345, 8
      %s347 = scalar_lea.vmem %s5, %s346
      %p348 = scmp.lt.s32.totalorder %s19, 1
      %s349 = scalar_select %p348, %s19, 1
      %s350 = smul.addr %s349, 8
      %s351 = scalar_lea.vmem %s8, %s350
      %v353 = vld [vmem:[%s335] sm:$0xf]
      %v354 = vunpack.c.l.bf16 %v353
      %v355 = vld [vmem:[%s339] sm:$0xf]
      %v356 = vunpack.c.l.bf16 %v355
      %v357 = vld [vmem:[%s343] sm:$0xf]
      %v358 = vld [vmem:[%s3] sm:$0xff]
      %v359 = vld [vmem:[%s4] sm:$0xff]
      %v360 = vlaneseq
      %v361 = vshrl.u32 %v360, 7
      %v362 = vlaneseq
      %v363 = vand.u32 %v362, 127
      %vm364 = vcmp.le.s32.totalorder %v363, %v361
      %v365 = vsub.f32 0.0, %v354
      %367 = vrot.lane.b32.xlu0 %v365, 124
      %v368 = vpop.permute.xlu0 %367
      %371 = vrot.lane.b32.xlu0 %v354, 4
      %v372 = vpop.permute.xlu0 %371
      %vm374 = vcmask 31744
      %v375 = vsel %vm374, %v368, %v372
      %v376 = vmul.f32 %v354, %v358
      %v377 = vmul.f32 %v375, %v359
      %v378 = vadd.f32 %v376, %v377
      %v379 = vpack.c.bf16 %v378, %v378
      %v380 = vsub.f32 0.0, %v356
      %382 = vrot.lane.b32.xlu0 %v380, 124
      %v383 = vpop.permute.xlu0 %382
      %386 = vrot.lane.b32.xlu0 %v356, 4
      %v387 = vpop.permute.xlu0 %386
      %v389 = vsel %vm374, %v383, %v387
      %v390 = vmul.f32 %v356, %v358
      %v391 = vmul.f32 %v389, %v359
      %v392 = vadd.f32 %v390, %v391
      %v393 = vpack.c.bf16 %v392, %v392
      %vm394 = vcmask 64512
      %v396 = vsel %vm394, %v379, 0
      %v399 = vsel %vm394, %v393, 0
      %401 = vmatprep.subr.bf16.mxu0 0
      %402 = vmatpush1.bf16.xpose.msra.mxu0 0
      %403 = vmatprep.subr.bf16.mxu0 0
      %404 = vmatpush1.bf16.xpose.msra.mxu0 0
      %405 = vmatprep.subr.bf16.mxu0 0
      %406 = vmatpush1.bf16.xpose.msra.mxu0 0
      %407 = vmatprep.subr.bf16.mxu0 0
      %408 = vmatpush1.bf16.xpose.msra.mxu0 0
      %409 = vmatprep.subr.bf16.mxu0 0
      %410 = vmatpush1.bf16.xpose.msra.mxu0 0
      %411 = vmatprep.subr.bf16.mxu0 0
      %412 = vmatpush1.bf16.xpose.msra.mxu0 0
      %413 = vmatprep.subr.bf16.mxu0 0
      %414 = vmatpush1.bf16.xpose.msra.mxu0 0
      %415 = vmatprep.subr.bf16.mxu0 0
      %416 = vmatpush1.bf16.xpose.msra.mxu0 %v399
      %417 = vmatprep.subr.bf16.mxu0 0
      %418 = vmatpush2.bf16.xpose.msra.mxu0 0
      %419 = vmatprep.subr.bf16.mxu0 0
      %420 = vmatpush2.bf16.xpose.msra.mxu0 0
      %421 = vmatprep.subr.bf16.mxu0 0
      %422 = vmatpush2.bf16.xpose.msra.mxu0 0
      %423 = vmatprep.subr.bf16.mxu0 0
      %424 = vmatpush2.bf16.xpose.msra.mxu0 0
      %425 = vmatprep.subr.bf16.mxu0 0
      %426 = vmatpush2.bf16.xpose.msra.mxu0 0
      %427 = vmatprep.subr.bf16.mxu0 0
      %428 = vmatpush2.bf16.xpose.msra.mxu0 0
      %429 = vmatprep.subr.bf16.mxu0 0
      %430 = vmatpush2.bf16.xpose.msra.mxu0 0
      %431 = vmatprep.subr.bf16.mxu0 0
      %432 = vmatpush2.bf16.xpose.msra.mxu0 0
      %433 = vmatprep.mubr.bf16.mxu0 0
      %434 = vmatmul.mubr.bf16.gmra.mxu0 %v396
      %v435 = vpop.f32.mrf.mxu0
      %v436 = vadd.f32 0.0, %v435
      %v437 = vpop.f32.mrf.mxu0
      %v438 = vpop.f32.mrf.mxu0
      %v439 = vpop.f32.mrf.mxu0
      %440 = vdwg.mxu0
      %v441 = vmul.f32 %v436, 0.35355338
      %v442 = vsel %vm364, %v441, -1e+30
      %v443 = vsel %vm394, %v442, -inf
      %444 = vmax.xlane.f32.xlu0 %v443
      %v445 = vpop.xlane.xlu0 %444
      %v446 = vsub.f32 %v442, %v445
      %v447 = vmul.f32 %v446, 1.442695
      %v448 = vpow.pop %v447
      %v449 = vsel %vm394, %v448, 0.0
      %450 = vadd.xlane.f32.xlu0 %v449
      %v451 = vpop.xlane.xlu0 %450
      %v452 = vrcp.pop %v451
      %v453 = vmul.f32 %v448, %v452
      %v454 = vpack.c.bf16 %v453, %v453
      %v456 = vsel %vm394, %v454, 0
      %vm458 = vcmask 1043456
      %v460 = vsel %vm458, %v357, 0
      %462 = vmatprep.subr.bf16.mxu0 0
      %463 = vmatpush1.bf16.msra.mxu0 0
      %464 = vmatprep.subr.bf16.mxu0 0
      %465 = vmatpush1.bf16.msra.mxu0 0
      %466 = vmatprep.subr.bf16.mxu0 0
      %467 = vmatpush1.bf16.msra.mxu0 0
      %468 = vmatprep.subr.bf16.mxu0 0
      %469 = vmatpush1.bf16.msra.mxu0 0
      %470 = vmatprep.subr.bf16.mxu0 0
      %471 = vmatpush1.bf16.msra.mxu0 0
      %472 = vmatprep.subr.bf16.mxu0 0
      %473 = vmatpush1.bf16.msra.mxu0 0
      %474 = vmatprep.subr.bf16.mxu0 0
      %475 = vmatpush1.bf16.msra.mxu0 0
      %476 = vmatprep.subr.bf16.mxu0 0
      %477 = vmatpush1.bf16.msra.mxu0 %v460
      %478 = vmatprep.subr.bf16.mxu0 0
      %479 = vmatpush2.bf16.msra.mxu0 0
      %480 = vmatprep.subr.bf16.mxu0 0
      %481 = vmatpush2.bf16.msra.mxu0 0
      %482 = vmatprep.subr.bf16.mxu0 0
      %483 = vmatpush2.bf16.msra.mxu0 0
      %484 = vmatprep.subr.bf16.mxu0 0
      %485 = vmatpush2.bf16.msra.mxu0 0
      %486 = vmatprep.subr.bf16.mxu0 0
      %487 = vmatpush2.bf16.msra.mxu0 0
      %488 = vmatprep.subr.bf16.mxu0 0
      %489 = vmatpush2.bf16.msra.mxu0 0
      %490 = vmatprep.subr.bf16.mxu0 0
      %491 = vmatpush2.bf16.msra.mxu0 0
      %492 = vmatprep.subr.bf16.mxu0 0
      %493 = vmatpush2.bf16.msra.mxu0 0
      %494 = vmatprep.mubr.bf16.mxu0 0
      %495 = vmatmul.mubr.bf16.gmra.mxu0 %v456
      %v496 = vpop.f32.mrf.mxu0
      %v497 = vadd.f32 0.0, %v496
      %v498 = vpop.f32.mrf.mxu0
      %v499 = vpop.f32.mrf.mxu0
      %v500 = vpop.f32.mrf.mxu0
      %501 = vdwg.mxu0
      %502 = vrot.lane.b32.xlu0 %v365, 116
      %v503 = vpop.permute.xlu0 %502
      %505 = vrot.lane.b32.xlu0 %v354, 124
      %v506 = vpop.permute.xlu0 %505
      %v508 = vsel %vm374, %v503, %v506
      %510 = vrot.lane.b32.xlu0 %v358, 8
      %v511 = vpop.permute.xlu0 %510
      %v513 = vmul.f32 %v354, %v511
      %v514 = vmul.f32 %v508, %v359
      %516 = vrot.lane.b32.xlu0 %v514, 8
      %v517 = vpop.permute.xlu0 %516
      %v519 = vadd.f32 %v513, %v517
      %v520 = vpack.c.bf16 %v519, %v519
      %521 = vrot.lane.b32.xlu0 %v380, 116
      %v522 = vpop.permute.xlu0 %521
      %524 = vrot.lane.b32.xlu0 %v356, 124
      %v525 = vpop.permute.xlu0 %524
      %v527 = vsel %vm374, %v522, %v525
      %v528 = vmul.f32 %v356, %v511
      %v529 = vmul.f32 %v527, %v359
      %531 = vrot.lane.b32.xlu0 %v529, 8
      %v532 = vpop.permute.xlu0 %531
      %v534 = vadd.f32 %v528, %v532
      %v535 = vpack.c.bf16 %v534, %v534
      %537 = vrot.lane.b32.xlu0 %v520, 120
      %v538 = vpop.permute.xlu0 %537
      %540 = vrot.lane.b32.xlu0 %v535, 120
      %v541 = vpop.permute.xlu0 %540
      %v543 = vsel %vm394, %v538, 0
      %v546 = vsel %vm394, %v541, 0
      %548 = vmatprep.subr.bf16.mxu0 0
      %549 = vmatpush1.bf16.xpose.msra.mxu0 0
      %550 = vmatprep.subr.bf16.mxu0 0
      %551 = vmatpush1.bf16.xpose.msra.mxu0 0
      %552 = vmatprep.subr.bf16.mxu0 0
      %553 = vmatpush1.bf16.xpose.msra.mxu0 0
      %554 = vmatprep.subr.bf16.mxu0 0
      %555 = vmatpush1.bf16.xpose.msra.mxu0 0
      %556 = vmatprep.subr.bf16.mxu0 0
      %557 = vmatpush1.bf16.xpose.msra.mxu0 0
      %558 = vmatprep.subr.bf16.mxu0 0
      %559 = vmatpush1.bf16.xpose.msra.mxu0 0
      %560 = vmatprep.subr.bf16.mxu0 0
      %561 = vmatpush1.bf16.xpose.msra.mxu0 0
      %562 = vmatprep.subr.bf16.mxu0 0
      %563 = vmatpush1.bf16.xpose.msra.mxu0 %v546
      %564 = vmatprep.subr.bf16.mxu0 0
      %565 = vmatpush2.bf16.xpose.msra.mxu0 0
      %566 = vmatprep.subr.bf16.mxu0 0
      %567 = vmatpush2.bf16.xpose.msra.mxu0 0
      %568 = vmatprep.subr.bf16.mxu0 0
      %569 = vmatpush2.bf16.xpose.msra.mxu0 0
      %570 = vmatprep.subr.bf16.mxu0 0
      %571 = vmatpush2.bf16.xpose.msra.mxu0 0
      %572 = vmatprep.subr.bf16.mxu0 0
      %573 = vmatpush2.bf16.xpose.msra.mxu0 0
      %574 = vmatprep.subr.bf16.mxu0 0
      %575 = vmatpush2.bf16.xpose.msra.mxu0 0
      %576 = vmatprep.subr.bf16.mxu0 0
      %577 = vmatpush2.bf16.xpose.msra.mxu0 0
      %578 = vmatprep.subr.bf16.mxu0 0
      %579 = vmatpush2.bf16.xpose.msra.mxu0 0
      %580 = vmatprep.mubr.bf16.mxu0 0
      %581 = vmatmul.mubr.bf16.gmra.mxu0 %v543
      %v582 = vpop.f32.mrf.mxu0
      %v583 = vadd.f32 0.0, %v582
      %v584 = vpop.f32.mrf.mxu0
      %v585 = vpop.f32.mrf.mxu0
      %v586 = vpop.f32.mrf.mxu0
      %587 = vdwg.mxu0
      %v588 = vmul.f32 %v583, 0.35355338
      %v589 = vsel %vm364, %v588, -1e+30
      %v590 = vsel %vm394, %v589, -inf
      %591 = vmax.xlane.f32.xlu0 %v590
      %v592 = vpop.xlane.xlu0 %591
      %v593 = vsub.f32 %v589, %v592
      %v594 = vmul.f32 %v593, 1.442695
      %v595 = vpow.pop %v594
      %v596 = vsel %vm394, %v595, 0.0
      %597 = vadd.xlane.f32.xlu0 %v596
      %v598 = vpop.xlane.xlu0 %597
      %v599 = vrcp.pop %v598
      %v600 = vmul.f32 %v595, %v599
      %v601 = vpack.c.bf16 %v600, %v600
      %v603 = vunpack.c.l.b16 %v357
      %v604 = vpack.c.b16 %v603, %v603
      %605 = vrot.lane.b32.xlu0 %v604, 120
      %v606 = vpop.permute.xlu0 %605
      %v608 = vsel %vm394, %v601, 0
      %v611 = vsel %vm458, %v606, 0
      %613 = vmatprep.subr.bf16.mxu0 0
      %614 = vmatpush1.bf16.msra.mxu0 0
      %615 = vmatprep.subr.bf16.mxu0 0
      %616 = vmatpush1.bf16.msra.mxu0 0
      %617 = vmatprep.subr.bf16.mxu0 0
      %618 = vmatpush1.bf16.msra.mxu0 0
      %619 = vmatprep.subr.bf16.mxu0 0
      %620 = vmatpush1.bf16.msra.mxu0 0
      %621 = vmatprep.subr.bf16.mxu0 0
      %622 = vmatpush1.bf16.msra.mxu0 0
      %623 = vmatprep.subr.bf16.mxu0 0
      %624 = vmatpush1.bf16.msra.mxu0 0
      %625 = vmatprep.subr.bf16.mxu0 0
      %626 = vmatpush1.bf16.msra.mxu0 0
      %627 = vmatprep.subr.bf16.mxu0 0
      %628 = vmatpush1.bf16.msra.mxu0 %v611
      %629 = vmatprep.subr.bf16.mxu0 0
      %630 = vmatpush2.bf16.msra.mxu0 0
      %631 = vmatprep.subr.bf16.mxu0 0
      %632 = vmatpush2.bf16.msra.mxu0 0
      %633 = vmatprep.subr.bf16.mxu0 0
      %634 = vmatpush2.bf16.msra.mxu0 0
      %635 = vmatprep.subr.bf16.mxu0 0
      %636 = vmatpush2.bf16.msra.mxu0 0
      %637 = vmatprep.subr.bf16.mxu0 0
      %638 = vmatpush2.bf16.msra.mxu0 0
      %639 = vmatprep.subr.bf16.mxu0 0
      %640 = vmatpush2.bf16.msra.mxu0 0
      %641 = vmatprep.subr.bf16.mxu0 0
      %642 = vmatpush2.bf16.msra.mxu0 0
      %643 = vmatprep.subr.bf16.mxu0 0
      %644 = vmatpush2.bf16.msra.mxu0 0
      %645 = vmatprep.mubr.bf16.mxu0 0
      %646 = vmatmul.mubr.bf16.gmra.mxu0 %v608
      %v647 = vpop.f32.mrf.mxu0
      %v648 = vadd.f32 0.0, %v647
      %v649 = vpop.f32.mrf.mxu0
      %v650 = vpop.f32.mrf.mxu0
      %v651 = vpop.f32.mrf.mxu0
      %652 = vdwg.mxu0
      %653 = vrot.lane.b32.xlu0 %v365, 108
      %v654 = vpop.permute.xlu0 %653
      %656 = vrot.lane.b32.xlu0 %v354, 116
      %v657 = vpop.permute.xlu0 %656
      %v659 = vsel %vm374, %v654, %v657
      %660 = vrot.lane.b32.xlu0 %v358, 16
      %v661 = vpop.permute.xlu0 %660
      %v663 = vmul.f32 %v354, %v661
      %v664 = vmul.f32 %v659, %v359
      %666 = vrot.lane.b32.xlu0 %v664, 16
      %v667 = vpop.permute.xlu0 %666
      %v669 = vadd.f32 %v663, %v667
      %v670 = vpack.c.bf16 %v669, %v669
      %671 = vrot.lane.b32.xlu0 %v380, 108
      %v672 = vpop.permute.xlu0 %671
      %674 = vrot.lane.b32.xlu0 %v356, 116
      %v675 = vpop.permute.xlu0 %674
      %v677 = vsel %vm374, %v672, %v675
      %v678 = vmul.f32 %v356, %v661
      %v679 = vmul.f32 %v677, %v359
      %681 = vrot.lane.b32.xlu0 %v679, 16
      %v682 = vpop.permute.xlu0 %681
      %v684 = vadd.f32 %v678, %v682
      %v685 = vpack.c.bf16 %v684, %v684
      %687 = vrot.lane.b32.xlu0 %v670, 112
      %v688 = vpop.permute.xlu0 %687
      %690 = vrot.lane.b32.xlu0 %v685, 112
      %v691 = vpop.permute.xlu0 %690
      %v693 = vsel %vm394, %v688, 0
      %v696 = vsel %vm394, %v691, 0
      %698 = vmatprep.subr.bf16.mxu0 0
      %699 = vmatpush1.bf16.xpose.msra.mxu0 0
      %700 = vmatprep.subr.bf16.mxu0 0
      %701 = vmatpush1.bf16.xpose.msra.mxu0 0
      %702 = vmatprep.subr.bf16.mxu0 0
      %703 = vmatpush1.bf16.xpose.msra.mxu0 0
      %704 = vmatprep.subr.bf16.mxu0 0
      %705 = vmatpush1.bf16.xpose.msra.mxu0 0
      %706 = vmatprep.subr.bf16.mxu0 0
      %707 = vmatpush1.bf16.xpose.msra.mxu0 0
      %708 = vmatprep.subr.bf16.mxu0 0
      %709 = vmatpush1.bf16.xpose.msra.mxu0 0
      %710 = vmatprep.subr.bf16.mxu0 0
      %711 = vmatpush1.bf16.xpose.msra.mxu0 0
      %712 = vmatprep.subr.bf16.mxu0 0
      %713 = vmatpush1.bf16.xpose.msra.mxu0 %v696
      %714 = vmatprep.subr.bf16.mxu0 0
      %715 = vmatpush2.bf16.xpose.msra.mxu0 0
      %716 = vmatprep.subr.bf16.mxu0 0
      %717 = vmatpush2.bf16.xpose.msra.mxu0 0
      %718 = vmatprep.subr.bf16.mxu0 0
      %719 = vmatpush2.bf16.xpose.msra.mxu0 0
      %720 = vmatprep.subr.bf16.mxu0 0
      %721 = vmatpush2.bf16.xpose.msra.mxu0 0
      %722 = vmatprep.subr.bf16.mxu0 0
      %723 = vmatpush2.bf16.xpose.msra.mxu0 0
      %724 = vmatprep.subr.bf16.mxu0 0
      %725 = vmatpush2.bf16.xpose.msra.mxu0 0
      %726 = vmatprep.subr.bf16.mxu0 0
      %727 = vmatpush2.bf16.xpose.msra.mxu0 0
      %728 = vmatprep.subr.bf16.mxu0 0
      %729 = vmatpush2.bf16.xpose.msra.mxu0 0
      %730 = vmatprep.mubr.bf16.mxu0 0
      %731 = vmatmul.mubr.bf16.gmra.mxu0 %v693
      %v732 = vpop.f32.mrf.mxu0
      %v733 = vadd.f32 0.0, %v732
      %v734 = vpop.f32.mrf.mxu0
      %v735 = vpop.f32.mrf.mxu0
      %v736 = vpop.f32.mrf.mxu0
      %737 = vdwg.mxu0
      %v738 = vmul.f32 %v733, 0.35355338
      %v739 = vsel %vm364, %v738, -1e+30
      %v740 = vsel %vm394, %v739, -inf
      %741 = vmax.xlane.f32.xlu0 %v740
      %v742 = vpop.xlane.xlu0 %741
      %v743 = vsub.f32 %v739, %v742
      %v744 = vmul.f32 %v743, 1.442695
      %v745 = vpow.pop %v744
      %v746 = vsel %vm394, %v745, 0.0
      %747 = vadd.xlane.f32.xlu0 %v746
      %v748 = vpop.xlane.xlu0 %747
      %v749 = vrcp.pop %v748
      %v750 = vmul.f32 %v745, %v749
      %v751 = vpack.c.bf16 %v750, %v750
      %752 = vrot.lane.b32.xlu0 %v604, 112
      %v753 = vpop.permute.xlu0 %752
      %v755 = vsel %vm394, %v751, 0
      %v758 = vsel %vm458, %v753, 0
      %760 = vmatprep.subr.bf16.mxu0 0
      %761 = vmatpush1.bf16.msra.mxu0 0
      %762 = vmatprep.subr.bf16.mxu0 0
      %763 = vmatpush1.bf16.msra.mxu0 0
      %764 = vmatprep.subr.bf16.mxu0 0
      %765 = vmatpush1.bf16.msra.mxu0 0
      %766 = vmatprep.subr.bf16.mxu0 0
      %767 = vmatpush1.bf16.msra.mxu0 0
      %768 = vmatprep.subr.bf16.mxu0 0
      %769 = vmatpush1.bf16.msra.mxu0 0
      %770 = vmatprep.subr.bf16.mxu0 0
      %771 = vmatpush1.bf16.msra.mxu0 0
      %772 = vmatprep.subr.bf16.mxu0 0
      %773 = vmatpush1.bf16.msra.mxu0 0
      %774 = vmatprep.subr.bf16.mxu0 0
      %775 = vmatpush1.bf16.msra.mxu0 %v758
      %776 = vmatprep.subr.bf16.mxu0 0
      %777 = vmatpush2.bf16.msra.mxu0 0
      %778 = vmatprep.subr.bf16.mxu0 0
      %779 = vmatpush2.bf16.msra.mxu0 0
      %780 = vmatprep.subr.bf16.mxu0 0
      %781 = vmatpush2.bf16.msra.mxu0 0
      %782 = vmatprep.subr.bf16.mxu0 0
      %783 = vmatpush2.bf16.msra.mxu0 0
      %784 = vmatprep.subr.bf16.mxu0 0
      %785 = vmatpush2.bf16.msra.mxu0 0
      %786 = vmatprep.subr.bf16.mxu0 0
      %787 = vmatpush2.bf16.msra.mxu0 0
      %788 = vmatprep.subr.bf16.mxu0 0
      %789 = vmatpush2.bf16.msra.mxu0 0
      %790 = vmatprep.subr.bf16.mxu0 0
      %791 = vmatpush2.bf16.msra.mxu0 0
      %792 = vmatprep.mubr.bf16.mxu0 0
      %793 = vmatmul.mubr.bf16.gmra.mxu0 %v755
      %v794 = vpop.f32.mrf.mxu0
      %v795 = vadd.f32 0.0, %v794
      %v796 = vpop.f32.mrf.mxu0
      %v797 = vpop.f32.mrf.mxu0
      %v798 = vpop.f32.mrf.mxu0
      %799 = vdwg.mxu0
      %800 = vrot.lane.b32.xlu0 %v365, 100
      %v801 = vpop.permute.xlu0 %800
      %803 = vrot.lane.b32.xlu0 %v354, 108
      %v804 = vpop.permute.xlu0 %803
      %v806 = vsel %vm374, %v801, %v804
      %807 = vrot.lane.b32.xlu0 %v358, 24
      %v808 = vpop.permute.xlu0 %807
      %v810 = vmul.f32 %v354, %v808
      %v811 = vmul.f32 %v806, %v359
      %813 = vrot.lane.b32.xlu0 %v811, 24
      %v814 = vpop.permute.xlu0 %813
      %v816 = vadd.f32 %v810, %v814
      %v817 = vpack.c.bf16 %v816, %v816
      %818 = vrot.lane.b32.xlu0 %v380, 100
      %v819 = vpop.permute.xlu0 %818
      %821 = vrot.lane.b32.xlu0 %v356, 108
      %v822 = vpop.permute.xlu0 %821
      %v824 = vsel %vm374, %v819, %v822
      %v825 = vmul.f32 %v356, %v808
      %v826 = vmul.f32 %v824, %v359
      %828 = vrot.lane.b32.xlu0 %v826, 24
      %v829 = vpop.permute.xlu0 %828
      %v831 = vadd.f32 %v825, %v829
      %v832 = vpack.c.bf16 %v831, %v831
      %834 = vrot.lane.b32.xlu0 %v817, 104
      %v835 = vpop.permute.xlu0 %834
      %837 = vrot.lane.b32.xlu0 %v832, 104
      %v838 = vpop.permute.xlu0 %837
      %v840 = vsel %vm394, %v835, 0
      %v843 = vsel %vm394, %v838, 0
      %845 = vmatprep.subr.bf16.mxu0 0
      %846 = vmatpush1.bf16.xpose.msra.mxu0 0
      %847 = vmatprep.subr.bf16.mxu0 0
      %848 = vmatpush1.bf16.xpose.msra.mxu0 0
      %849 = vmatprep.subr.bf16.mxu0 0
      %850 = vmatpush1.bf16.xpose.msra.mxu0 0
      %851 = vmatprep.subr.bf16.mxu0 0
      %852 = vmatpush1.bf16.xpose.msra.mxu0 0
      %853 = vmatprep.subr.bf16.mxu0 0
      %854 = vmatpush1.bf16.xpose.msra.mxu0 0
      %855 = vmatprep.subr.bf16.mxu0 0
      %856 = vmatpush1.bf16.xpose.msra.mxu0 0
      %857 = vmatprep.subr.bf16.mxu0 0
      %858 = vmatpush1.bf16.xpose.msra.mxu0 0
      %859 = vmatprep.subr.bf16.mxu0 0
      %860 = vmatpush1.bf16.xpose.msra.mxu0 %v843
      %861 = vmatprep.subr.bf16.mxu0 0
      %862 = vmatpush2.bf16.xpose.msra.mxu0 0
      %863 = vmatprep.subr.bf16.mxu0 0
      %864 = vmatpush2.bf16.xpose.msra.mxu0 0
      %865 = vmatprep.subr.bf16.mxu0 0
      %866 = vmatpush2.bf16.xpose.msra.mxu0 0
      %867 = vmatprep.subr.bf16.mxu0 0
      %868 = vmatpush2.bf16.xpose.msra.mxu0 0
      %869 = vmatprep.subr.bf16.mxu0 0
      %870 = vmatpush2.bf16.xpose.msra.mxu0 0
      %871 = vmatprep.subr.bf16.mxu0 0
      %872 = vmatpush2.bf16.xpose.msra.mxu0 0
      %873 = vmatprep.subr.bf16.mxu0 0
      %874 = vmatpush2.bf16.xpose.msra.mxu0 0
      %875 = vmatprep.subr.bf16.mxu0 0
      %876 = vmatpush2.bf16.xpose.msra.mxu0 0
      %877 = vmatprep.mubr.bf16.mxu0 0
      %878 = vmatmul.mubr.bf16.gmra.mxu0 %v840
      %v879 = vpop.f32.mrf.mxu0
      %v880 = vadd.f32 0.0, %v879
      %v881 = vpop.f32.mrf.mxu0
      %v882 = vpop.f32.mrf.mxu0
      %v883 = vpop.f32.mrf.mxu0
      %884 = vdwg.mxu0
      %v885 = vmul.f32 %v880, 0.35355338
      %v886 = vsel %vm364, %v885, -1e+30
      %v887 = vsel %vm394, %v886, -inf
      %888 = vmax.xlane.f32.xlu0 %v887
      %v889 = vpop.xlane.xlu0 %888
      %v890 = vsub.f32 %v886, %v889
      %v891 = vmul.f32 %v890, 1.442695
      %v892 = vpow.pop %v891
      %v893 = vsel %vm394, %v892, 0.0
      %894 = vadd.xlane.f32.xlu0 %v893
      %v895 = vpop.xlane.xlu0 %894
      %v896 = vrcp.pop %v895
      %v897 = vmul.f32 %v892, %v896
      %v898 = vpack.c.bf16 %v897, %v897
      %899 = vrot.lane.b32.xlu0 %v604, 104
      %v900 = vpop.permute.xlu0 %899
      %v902 = vsel %vm394, %v898, 0
      %v905 = vsel %vm458, %v900, 0
      %907 = vmatprep.subr.bf16.mxu0 0
      %908 = vmatpush1.bf16.msra.mxu0 0
      %909 = vmatprep.subr.bf16.mxu0 0
      %910 = vmatpush1.bf16.msra.mxu0 0
      %911 = vmatprep.subr.bf16.mxu0 0
      %912 = vmatpush1.bf16.msra.mxu0 0
      %913 = vmatprep.subr.bf16.mxu0 0
      %914 = vmatpush1.bf16.msra.mxu0 0
      %915 = vmatprep.subr.bf16.mxu0 0
      %916 = vmatpush1.bf16.msra.mxu0 0
      %917 = vmatprep.subr.bf16.mxu0 0
      %918 = vmatpush1.bf16.msra.mxu0 0
      %919 = vmatprep.subr.bf16.mxu0 0
      %920 = vmatpush1.bf16.msra.mxu0 0
      %921 = vmatprep.subr.bf16.mxu0 0
      %922 = vmatpush1.bf16.msra.mxu0 %v905
      %923 = vmatprep.subr.bf16.mxu0 0
      %924 = vmatpush2.bf16.msra.mxu0 0
      %925 = vmatprep.subr.bf16.mxu0 0
      %926 = vmatpush2.bf16.msra.mxu0 0
      %927 = vmatprep.subr.bf16.mxu0 0
      %928 = vmatpush2.bf16.msra.mxu0 0
      %929 = vmatprep.subr.bf16.mxu0 0
      %930 = vmatpush2.bf16.msra.mxu0 0
      %931 = vmatprep.subr.bf16.mxu0 0
      %932 = vmatpush2.bf16.msra.mxu0 0
      %933 = vmatprep.subr.bf16.mxu0 0
      %934 = vmatpush2.bf16.msra.mxu0 0
      %935 = vmatprep.subr.bf16.mxu0 0
      %936 = vmatpush2.bf16.msra.mxu0 0
      %937 = vmatprep.subr.bf16.mxu0 0
      %938 = vmatpush2.bf16.msra.mxu0 0
      %939 = vmatprep.mubr.bf16.mxu0 0
      %940 = vmatmul.mubr.bf16.gmra.mxu0 %v902
      %v941 = vpop.f32.mrf.mxu0
      %v942 = vadd.f32 0.0, %v941
      %v943 = vpop.f32.mrf.mxu0
      %v944 = vpop.f32.mrf.mxu0
      %v945 = vpop.f32.mrf.mxu0
      %946 = vdwg.mxu0
      %948 = vrot.lane.b32.xlu0 %v648, 8
      %v949 = vpop.permute.xlu0 %948
      %952 = vrot.lane.b32.xlu0 %v795, 16
      %v953 = vpop.permute.xlu0 %952
      %956 = vrot.lane.b32.xlu0 %v942, 24
      %v957 = vpop.permute.xlu0 %956
      %v959 = vsel %vm394, %v497, %v949
      %vm960 = vcmask 130048
      %v961 = vsel %vm960, %v959, %v953
      %vm962 = vcmask 195584
      %v963 = vsel %vm962, %v961, %v957
      %v964 = vpack.c.bf16 %v963, %v963
      %v965 = vld [vmem:[%s6] sm:$0xf]
      %v966 = vld [vmem:[%s6 + $0x4] sm:$0xf]
      %v967 = vld [vmem:[%s6 + $0x8] sm:$0xf]
      %v968 = vld [vmem:[%s6 + $0xc] sm:$0xf]
      %v973 = vunpack.c.l.b16 %v965
      %v974 = vunpack.c.l.b16 %v966
      %v975 = vunpack.c.l.b16 %v967
      %v976 = vunpack.c.l.b16 %v968
      %v977 = vpack.c.b16 %v974, %v973
      %v978 = vpack.c.b16 %v976, %v975
      %vm981 = vcmask 261120
      %v983 = vsel %vm981, %v964, 0
      %985 = vmatprep.subr.bf16.mxu0 0
      %986 = vmatpush1.bf16.msra.mxu0 0
      %987 = vmatprep.subr.bf16.mxu0 0
      %988 = vmatpush1.bf16.msra.mxu0 0
      %989 = vmatprep.subr.bf16.mxu0 0
      %990 = vmatpush1.bf16.msra.mxu0 0
      %991 = vmatprep.subr.bf16.mxu0 0
      %992 = vmatpush1.bf16.msra.mxu0 0
      %993 = vmatprep.subr.bf16.mxu0 0
      %994 = vmatpush1.bf16.msra.mxu0 0
      %995 = vmatprep.subr.bf16.mxu0 0
      %996 = vmatpush1.bf16.msra.mxu0 0
      %997 = vmatprep.subr.bf16.mxu0 0
      %998 = vmatpush1.bf16.msra.mxu0 %v978
      %999 = vmatprep.subr.bf16.mxu0 0
      %1000 = vmatpush1.bf16.msra.mxu0 %v977
      %1001 = vmatprep.subr.bf16.mxu0 0
      %1002 = vmatpush2.bf16.msra.mxu0 0
      %1003 = vmatprep.subr.bf16.mxu0 0
      %1004 = vmatpush2.bf16.msra.mxu0 0
      %1005 = vmatprep.subr.bf16.mxu0 0
      %1006 = vmatpush2.bf16.msra.mxu0 0
      %1007 = vmatprep.subr.bf16.mxu0 0
      %1008 = vmatpush2.bf16.msra.mxu0 0
      %1009 = vmatprep.subr.bf16.mxu0 0
      %1010 = vmatpush2.bf16.msra.mxu0 0
      %1011 = vmatprep.subr.bf16.mxu0 0
      %1012 = vmatpush2.bf16.msra.mxu0 0
      %1013 = vmatprep.subr.bf16.mxu0 0
      %1014 = vmatpush2.bf16.msra.mxu0 0
      %1015 = vmatprep.subr.bf16.mxu0 0
      %1016 = vmatpush2.bf16.msra.mxu0 0
      %1017 = vmatprep.mubr.bf16.mxu0 0
      %1018 = vmatmul.mubr.bf16.gmra.mxu0 %v983
      %v1019 = vpop.f32.mrf.mxu0
      %v1020 = vadd.f32 0.0, %v1019
      %v1021 = vpop.f32.mrf.mxu0
      %v1022 = vpop.f32.mrf.mxu0
      %v1023 = vpop.f32.mrf.mxu0
      %1024 = vdwg.mxu0
      %v1025 = vld [vmem:[%s347] sm:$0xff]
      %v1026 = vadd.f32 %v1025, %v1020
      %v1027 = vld [vmem:[%s7] sm:$0x1]
      %v1029 = vlaneseq
      %v1030 = vshrl.u32 %v1029, 7
      %v1031 = vsub.s32 0, %v1030
      %v1032 = vrot.slane %v1027, %v1031
      %v1034 = vadd.f32 %v1026, %v1032
      %1035 = vst.msk [vmem:[%s351] sm:$0xff] %vm981, %v1034
      %p1036 = scmp.lt.s32.totalorder %s19, 1
      %s1037 = scalar_select %p1036, %s19, 1
      %s1038 = smul.addr %s1037, 8
      %s1039 = scalar_lea.vmem %s8, %s1038
      // Predicated region
      $region53: #{llama_kinda_forward.8} parent=51 // pred_check
        %p1040 = pneg %p225
      $region54: #{llama_kinda_forward.8} parent=51 // pred_check_branch
        %1042 = sbr.rel (%p1040) target = $region56
      $region55: #{llama_kinda_forward.8} parent=51 // pred_region
        _
      $region56: #{llama_kinda_forward.8} parent=51 // pred_fallthru
        _
    $region52: #{llama_kinda_forward.8} parent=5 // pred_fallthru
      _
    %p1043 = scmp.le.s32.totalorder 2, %s14
    // Predicated region
    $region57: #{llama_kinda_forward.8} parent=5 // pred_check
      %p1044 = pneg %p1043
    $region58: #{llama_kinda_forward.8} parent=5 // pred_check_branch
      %1046 = sbr.rel (%p1044) target = $region60
    $region59: #{llama_kinda_forward.8} parent=5 // pred_region
      %s1047 = ssub.s32 %s14, 2
      // Predicated region
      $region61: #{llama_kinda_forward.8} parent=59 // pred_check
        %p1048 = pneg %p231
      $region62: #{llama_kinda_forward.8} parent=59 // pred_check_branch
        %1050 = sbr.rel (%p1048) target = $region64
      $region63: #{llama_kinda_forward.8} parent=59 // pred_region
        %p1051 = scmp.lt.s32.totalorder %s20, 1
        %s1052 = scalar_select %p1051, %s20, 1
        %s1053 = smul.addr %s1052, 8
        %s1054 = scalar_lea.vmem %s8, %s1053
      $region64: #{llama_kinda_forward.8} parent=59 // pred_fallthru
        _
    $region60: #{llama_kinda_forward.8} parent=5 // pred_fallthru
      _
  $region6: #{llama_kinda_forward.8} parent=0 // loop_footer
    %s18 = sadd.s32 1, %s14
  $region7: #{llama_kinda_forward.8} parent=0 // loop_footer_branch
    %13 = sbr.rel target = $region3
  $region8: #{llama_kinda_forward.8} parent=0 // loop_exit
    _

</llo_original>
